<compile_context>
chip_gen: v5e
topology: v5e:2x2
jax: 0.10.0
libtpu: 0.0.40
codegen_flags: <defaults>
</compile_context>

<pallas_src>
import functools

import jax
import jax.numpy as jnp
from jax.experimental import pallas as pl
from jax.experimental.pallas import tpu as pltpu

LANE = 128


def _round_up(v, m):
    return (v + m - 1) // m * m


def conv_bias_swish_kernel(x_ref, w_ref, b_ref, o_ref, *, TH, W, K, C_in_p, C_out_p):
    # x_ref: (1, H_tot, Wp, C_in_p)  full padded image for this batch element
    #        (block index depends only on n -> stays resident across row tiles)
    # w_ref: (K*K*C_in_p, C_out_p)   im2col-folded weights (resident)
    # b_ref: (1, C_out_p)            bias
    # o_ref: (1, TH, W, C_out_p)     one lane-dense output row tile
    r = pl.program_id(1)
    row0 = pl.multiple_of(r * TH, TH)

    # Build the im2col patch: K*K shifted windows folded into one lane-aligned
    # contraction axis (order (kh, kw, c) matches the weight reshape below).
    taps = []
    for kh in range(K):
        for kw in range(K):
            taps.append(x_ref[0, pl.ds(row0 + kh, TH), pl.ds(kw, W), :])
    patch = jnp.concatenate(taps, axis=-1).reshape(TH * W, K * K * C_in_p)

    # Single MXU matmul per tile; operands stay in input dtype, f32 accumulate.
    acc = jnp.dot(patch, w_ref[...], preferred_element_type=jnp.float32)
    acc = acc + b_ref[...].astype(jnp.float32)

    # Swish: x * sigmoid(x)   (exp routed to the EUP)
    y = acc * (1.0 / (1.0 + jnp.exp(-acc)))
    o_ref[0] = y.reshape(TH, W, C_out_p).astype(o_ref.dtype)


def conv_bn_act_2d(x_nchw, weight_oihw, bias, kernel_size, block_rows=8):
    """ConvBnAct2d forward. x_nchw: (N, C_in, H, W); weight: (C_out, C_in, K, K)."""
    N, C_in, H, W = x_nchw.shape
    C_out = weight_oihw.shape[0]
    K = kernel_size
    p = K // 2

    # Lane-dense channel padding.
    C_in_p = _round_up(C_in, LANE)
    C_out_p = _round_up(C_out, LANE)

    # Row tiling of the output (halo handled by slicing the resident input).
    TH = min(block_rows, H)
    R = (H + TH - 1) // TH
    H_out_pad = R * TH

    # NCHW -> NHWC, zero-pad: spatial halo (p each side, plus row-tile remainder
    # at the bottom) and channel padding to C_in_p.
    x = jnp.transpose(x_nchw, (0, 2, 3, 1))
    x_pad = jnp.pad(
        x, ((0, 0), (p, p + (H_out_pad - H)), (p, p), (0, C_in_p - C_in))
    )
    # TODO(synk): for very large feature maps, row-tile the input DMA with a
    # K-1 halo instead of keeping the whole padded image resident in VMEM.
    H_tot = H_out_pad + 2 * p
    Wp = W + 2 * p

    # OIHW -> (K, K, C_in, C_out) -> zero-pad channels -> (K*K*C_in_p, C_out_p).
    w = jnp.transpose(weight_oihw, (2, 3, 1, 0))
    w = jnp.pad(w, ((0, 0), (0, 0), (0, C_in_p - C_in), (0, C_out_p - C_out)))
    w2d = w.reshape(K * K * C_in_p, C_out_p)
    b = jnp.pad(bias, (0, C_out_p - C_out)).reshape(1, C_out_p)

    kernel = functools.partial(
        conv_bias_swish_kernel, TH=TH, W=W, K=K, C_in_p=C_in_p, C_out_p=C_out_p
    )

    itemsize = jnp.dtype(x.dtype).itemsize
    cost = pl.CostEstimate(
        flops=2 * N * H * W * K * K * C_in * C_out,
        transcendentals=N * H * W * C_out,
        bytes_accessed=(x_pad.size + w2d.size + b.size + N * H_out_pad * W * C_out_p)
        * itemsize,
    )

    out_nhwc = pl.pallas_call(
        kernel,
        out_shape=jax.ShapeDtypeStruct((N, H_out_pad, W, C_out_p), x.dtype),
        grid=(N, R),
        in_specs=[
            pl.BlockSpec((1, H_tot, Wp, C_in_p), lambda n, r: (n, 0, 0, 0)),
            pl.BlockSpec((K * K * C_in_p, C_out_p), lambda n, r: (0, 0)),
            pl.BlockSpec((1, C_out_p), lambda n, r: (0, 0)),
        ],
        out_specs=pl.BlockSpec((1, TH, W, C_out_p), lambda n, r: (n, r, 0, 0)),
        compiler_params=pltpu.CompilerParams(
            dimension_semantics=("parallel", "parallel")
        ),
        cost_estimate=cost,
    )(x_pad, w2d, b)

    # Drop channel / row padding, NHWC -> NCHW to match PyTorch convention.
    out_nhwc = out_nhwc[:, :H, :, :C_out]
    return jnp.transpose(out_nhwc, (0, 3, 1, 2))


def _reference(x_nchw, weight_oihw, bias, kernel_size):
    p = kernel_size // 2
    y = jax.lax.conv_general_dilated(
        x_nchw, weight_oihw,
        window_strides=(1, 1),
        padding=((p, p), (p, p)),
        dimension_numbers=("NCHW", "OIHW", "NCHW"),
    )
    y = y + bias[None, :, None, None]
    return y * jax.nn.sigmoid(y)


if __name__ == "__main__":
    # Small, module-consistent shapes.
    N, C_in, C_out, H, W, K = 2, 4, 8, 16, 16, 3

    key = jax.random.PRNGKey(0)
    kx, kw, kb = jax.random.split(key, 3)
    x = jax.random.normal(kx, (N, C_in, H, W), dtype=jnp.float32)
    weight = jax.random.normal(kw, (C_out, C_in, K, K), dtype=jnp.float32) * 0.1
    bias = jax.random.normal(kb, (C_out,), dtype=jnp.float32) * 0.1

    out = jax.block_until_ready(conv_bn_act_2d(x, weight, bias, K))
    ref = jax.block_until_ready(_reference(x, weight, bias, K))

    assert out.shape == (N, C_out, H, W)
    assert jnp.allclose(out, ref, atol=1e-4, rtol=1e-4), "mismatch vs reference"

    print("KERNEL_OK")
</pallas_src>

<mosaic_0001>
module attributes {stable_mosaic.version = 11 : i64} {
  func.func @conv_bias_swish_kernel(%arg0: i32, %arg1: i32, %arg2: memref<1x18x18x128xf32, #tpu.memory_space<vmem>>, %arg3: memref<1152x128xf32, #tpu.memory_space<vmem>>, %arg4: memref<1x128xf32, #tpu.memory_space<vmem>>, %arg5: memref<1x8x16x128xf32, #tpu.memory_space<vmem>>) attributes {dimension_semantics = [#tpu.dimension_semantics<parallel>, #tpu.dimension_semantics<parallel>], iteration_bounds = array<i64: 2, 2>, scalar_prefetch = 0 : i64, scratch_operands = 0 : i64, tpu.core_type = #tpu.core_type<tc>, window_params = [{transform_indices = @transform_0, window_bounds = array<i64: 1, 18, 18, 128>}, {pipeline_mode = #tpu.pipeline_mode<synchronous>, transform_indices = @transform_1, window_bounds = array<i64: 1152, 128>}, {pipeline_mode = #tpu.pipeline_mode<synchronous>, transform_indices = @transform_2, window_bounds = array<i64: 1, 128>}, {transform_indices = @transform_3, window_bounds = array<i64: 1, 8, 16, 128>}]} {
    %c8_i32 = arith.constant 8 : i32
    %0 = arith.muli %arg1, %c8_i32 : i32
    %1 = tpu.assume_multiple %0, 8 : i32
    %c0_i32 = arith.constant 0 : i32
    %2 = arith.addi %1, %c0_i32 : i32
    %c0 = arith.constant 0 : index
    %3 = arith.index_cast %2 : i32 to index
    %c0_0 = arith.constant 0 : index
    %c0_1 = arith.constant 0 : index
    %4 = vector.load %arg2[%c0, %3, %c0_0, %c0_1] : memref<1x18x18x128xf32, #tpu.memory_space<vmem>>, vector<1x8x16x128xf32>
    %5 = vector.shape_cast %4 : vector<1x8x16x128xf32> to vector<8x16x128xf32>
    %c0_i32_2 = arith.constant 0 : i32
    %6 = arith.addi %1, %c0_i32_2 : i32
    %c0_3 = arith.constant 0 : index
    %7 = arith.index_cast %6 : i32 to index
    %c1 = arith.constant 1 : index
    %c0_4 = arith.constant 0 : index
    %8 = vector.load %arg2[%c0_3, %7, %c1, %c0_4] : memref<1x18x18x128xf32, #tpu.memory_space<vmem>>, vector<1x8x16x128xf32>
    %9 = vector.shape_cast %8 : vector<1x8x16x128xf32> to vector<8x16x128xf32>
    %c0_i32_5 = arith.constant 0 : i32
    %10 = arith.addi %1, %c0_i32_5 : i32
    %c0_6 = arith.constant 0 : index
    %11 = arith.index_cast %10 : i32 to index
    %c2 = arith.constant 2 : index
    %c0_7 = arith.constant 0 : index
    %12 = vector.load %arg2[%c0_6, %11, %c2, %c0_7] : memref<1x18x18x128xf32, #tpu.memory_space<vmem>>, vector<1x8x16x128xf32>
    %13 = vector.shape_cast %12 : vector<1x8x16x128xf32> to vector<8x16x128xf32>
    %c1_i32 = arith.constant 1 : i32
    %14 = arith.addi %1, %c1_i32 : i32
    %c0_8 = arith.constant 0 : index
    %15 = arith.index_cast %14 : i32 to index
    %c0_9 = arith.constant 0 : index
    %c0_10 = arith.constant 0 : index
    %16 = vector.load %arg2[%c0_8, %15, %c0_9, %c0_10] : memref<1x18x18x128xf32, #tpu.memory_space<vmem>>, vector<1x8x16x128xf32>
    %17 = vector.shape_cast %16 : vector<1x8x16x128xf32> to vector<8x16x128xf32>
    %c1_i32_11 = arith.constant 1 : i32
    %18 = arith.addi %1, %c1_i32_11 : i32
    %c0_12 = arith.constant 0 : index
    %19 = arith.index_cast %18 : i32 to index
    %c1_13 = arith.constant 1 : index
    %c0_14 = arith.constant 0 : index
    %20 = vector.load %arg2[%c0_12, %19, %c1_13, %c0_14] : memref<1x18x18x128xf32, #tpu.memory_space<vmem>>, vector<1x8x16x128xf32>
    %21 = vector.shape_cast %20 : vector<1x8x16x128xf32> to vector<8x16x128xf32>
    %c1_i32_15 = arith.constant 1 : i32
    %22 = arith.addi %1, %c1_i32_15 : i32
    %c0_16 = arith.constant 0 : index
    %23 = arith.index_cast %22 : i32 to index
    %c2_17 = arith.constant 2 : index
    %c0_18 = arith.constant 0 : index
    %24 = vector.load %arg2[%c0_16, %23, %c2_17, %c0_18] : memref<1x18x18x128xf32, #tpu.memory_space<vmem>>, vector<1x8x16x128xf32>
    %25 = vector.shape_cast %24 : vector<1x8x16x128xf32> to vector<8x16x128xf32>
    %c2_i32 = arith.constant 2 : i32
    %26 = arith.addi %1, %c2_i32 : i32
    %c0_19 = arith.constant 0 : index
    %27 = arith.index_cast %26 : i32 to index
    %c0_20 = arith.constant 0 : index
    %c0_21 = arith.constant 0 : index
    %28 = vector.load %arg2[%c0_19, %27, %c0_20, %c0_21] : memref<1x18x18x128xf32, #tpu.memory_space<vmem>>, vector<1x8x16x128xf32>
    %29 = vector.shape_cast %28 : vector<1x8x16x128xf32> to vector<8x16x128xf32>
    %c2_i32_22 = arith.constant 2 : i32
    %30 = arith.addi %1, %c2_i32_22 : i32
    %c0_23 = arith.constant 0 : index
    %31 = arith.index_cast %30 : i32 to index
    %c1_24 = arith.constant 1 : index
    %c0_25 = arith.constant 0 : index
    %32 = vector.load %arg2[%c0_23, %31, %c1_24, %c0_25] : memref<1x18x18x128xf32, #tpu.memory_space<vmem>>, vector<1x8x16x128xf32>
    %33 = vector.shape_cast %32 : vector<1x8x16x128xf32> to vector<8x16x128xf32>
    %c2_i32_26 = arith.constant 2 : i32
    %34 = arith.addi %1, %c2_i32_26 : i32
    %c0_27 = arith.constant 0 : index
    %35 = arith.index_cast %34 : i32 to index
    %c2_28 = arith.constant 2 : index
    %c0_29 = arith.constant 0 : index
    %36 = vector.load %arg2[%c0_27, %35, %c2_28, %c0_29] : memref<1x18x18x128xf32, #tpu.memory_space<vmem>>, vector<1x8x16x128xf32>
    %37 = vector.shape_cast %36 : vector<1x8x16x128xf32> to vector<8x16x128xf32>
    %38 = tpu.concatenate %5, %9, %13, %17, %21, %25, %29, %33, %37 in 2 : vector<8x16x128xf32>, vector<8x16x128xf32>, vector<8x16x128xf32>, vector<8x16x128xf32>, vector<8x16x128xf32>, vector<8x16x128xf32>, vector<8x16x128xf32>, vector<8x16x128xf32>, vector<8x16x128xf32> -> vector<8x16x1152xf32>
    %39 = vector.shape_cast %38 : vector<8x16x1152xf32> to vector<128x1152xf32>
    %c0_30 = arith.constant 0 : index
    %c0_31 = arith.constant 0 : index
    %40 = vector.load %arg3[%c0_30, %c0_31] : memref<1152x128xf32, #tpu.memory_space<vmem>>, vector<1152x128xf32>
    %cst = arith.constant dense<0.000000e+00> : vector<128x128xf32>
    %41 = tpu.matmul %39, %40, %cst {dimension_numbers = #tpu.dot_dimension_numbers<[1], [0], [0], [1], [0, 0, 1, 1], [], []>} : vector<128x1152xf32>, vector<1152x128xf32>, vector<128x128xf32> -> vector<128x128xf32>
    %c0_32 = arith.constant 0 : index
    %c0_33 = arith.constant 0 : index
    %42 = vector.load %arg4[%c0_32, %c0_33] : memref<1x128xf32, #tpu.memory_space<vmem>>, vector<1x128xf32>
    %43 = vector.broadcast %42 : vector<1x128xf32> to vector<128x128xf32>
    %44 = arith.addf %41, %43 : vector<128x128xf32>
    %cst_34 = arith.constant 0.000000e+00 : f32
    %45 = vector.broadcast %cst_34 : f32 to vector<128x128xf32>
    %46 = arith.subf %45, %44 : vector<128x128xf32>
    %47 = math.exp %46 : vector<128x128xf32>
    %cst_35 = arith.constant 1.000000e+00 : f32
    %48 = vector.broadcast %cst_35 : f32 to vector<128x128xf32>
    %49 = arith.addf %48, %47 : vector<128x128xf32>
    %cst_36 = arith.constant 1.000000e+00 : f32
    %50 = vector.broadcast %cst_36 : f32 to vector<128x128xf32>
    %51 = arith.divf %50, %49 : vector<128x128xf32>
    %52 = arith.mulf %44, %51 : vector<128x128xf32>
    %53 = vector.shape_cast %52 : vector<128x128xf32> to vector<8x16x128xf32>
    %c0_37 = arith.constant 0 : index
    %c0_38 = arith.constant 0 : index
    %c0_39 = arith.constant 0 : index
    %c0_40 = arith.constant 0 : index
    %54 = vector.load %arg5[%c0_37, %c0_38, %c0_39, %c0_40] : memref<1x8x16x128xf32, #tpu.memory_space<vmem>>, vector<1x8x16x128xf32>
    %55 = vector.shape_cast %54 : vector<1x8x16x128xf32> to vector<8x16x128xf32>
    %56 = vector.shape_cast %53 : vector<8x16x128xf32> to vector<1x8x16x128xf32>
    tpu.vector_store %arg5[%c0_37, %c0_38, %c0_39, %c0_40], %56 {strides = array<i32>} : memref<1x8x16x128xf32, #tpu.memory_space<vmem>>, vector<1x8x16x128xf32>,
    return
  }
  func.func @transform_0(%arg0: i32, %arg1: i32) -> (i32, i32, i32, i32) {
    %c0_i32 = arith.constant 0 : i32
    %c0_i32_0 = arith.constant 0 : i32
    %c0_i32_1 = arith.constant 0 : i32
    %c0_i32_2 = arith.constant 0 : i32
    return %arg0, %c0_i32, %c0_i32_0, %c0_i32_1 : i32, i32, i32, i32
  }
  func.func @transform_1(%arg0: i32, %arg1: i32) -> (i32, i32) {
    %c0_i32 = arith.constant 0 : i32
    %c0_i32_0 = arith.constant 0 : i32
    %c0_i32_1 = arith.constant 0 : i32
    return %c0_i32, %c0_i32_0 : i32, i32
  }
  func.func @transform_2(%arg0: i32, %arg1: i32) -> (i32, i32) {
    %c0_i32 = arith.constant 0 : i32
    %c0_i32_0 = arith.constant 0 : i32
    %c0_i32_1 = arith.constant 0 : i32
    return %c0_i32, %c0_i32_0 : i32, i32
  }
  func.func @transform_3(%arg0: i32, %arg1: i32) -> (i32, i32, i32, i32) {
    %c0_i32 = arith.constant 0 : i32
    %c0_i32_0 = arith.constant 0 : i32
    %c0_i32_1 = arith.constant 0 : i32
    return %arg0, %arg1, %c0_i32, %c0_i32_0 : i32, i32, i32, i32
  }
}

</mosaic_0001>

<llo_original>
// kernel: tpu_custom_call.1
$region0: #{tpu_custom_call.1}
  #allocation0 [shape = 'u32[]', space=smem, size = 0x4, offset = 0x4, fixed_abs, tag = 'smem constant byte address 0x4 - core index']
  #allocation1 [shape = 'u32[72,128]{1,0:T(1,128)}', space=vmem, size = 0x9000, scoped, tag = 'internal scratch']
  %s0 = inlined_call_operand.vmem [shape: f32[2,18,18,128], index: 0, kind: input, shape index: {}]
  %s1 = inlined_call_operand.vmem [shape: f32[1152,128], index: 1, kind: input, shape index: {}]
  %s2 = inlined_call_operand.vmem [shape: f32[1,128], index: 2, kind: input, shape index: {}]
  %s3 = inlined_call_operand.hbm [shape: f32[2,16,16,128], index: 3, kind: output, shape index: {}]
  %s4 = sld [smem:[#allocation0]]
  $region45: #{tpu_custom_call.1} parent=0
    _
  %s6 = ssub.s32 1, %s4
  %s7 = scalar_select 0, %s6, %s4
  $region1: #{tpu_custom_call.1} parent=0
    #allocation2 [shape = 'u8[131072]{0}', space=vmem, size = 0x20000, scoped, tag = 'output window, operand 0']
    #allocation3 [shape = 's32[2]{0}', space=sflag, size = 0x8, scoped, tag = 'scoped memory for tpu_custom_call.1']
    %8 = vsyncpa [#allocation3], 0
    %s9 = scalar_lea.sflag [#allocation3], 1
    %10 = vsyncpa %s9, 0
    loop: start=0, step=1, limit=6
    $region2: #{tpu_custom_call.1} parent=1 // loop_pre_header
      _
    $region3: #{tpu_custom_call.1} parent=1 // loop_header
      %s12 = sphi 0, %s16
      %p13 = scmp.ge.s32.totalorder %s12, 6
      %s19 = sphi 0, %s31
      %s20 = sphi 0, %s27
      %s21 = sphi 0, %s19
      %s22 = sphi 0, %s20
      %s23 = sphi 0, %s21
      %s24 = sphi 0, %s22
      %s34 = sphi 0, %s36
      %s37 = sphi 0, %s34
      %s38 = sphi 0, %s37
      %s54 = sphi 0, %s38
      %s58 = sphi 0, %s58
      %s60 = sphi 0, %s58
      %s61 = sphi 0, %s60
      %s75 = sphi 0, %s61
      %s79 = sphi 0, %s79
      %s81 = sphi 0, %s79
      %s82 = sphi 0, %s81
      %s96 = sphi 0, %s82
      %s104 = sphi 0, %s106
      %s107 = sphi 0, %s104
      %s108 = sphi 0, %s107
      %s124 = sphi 0, %s108
    $region4: #{tpu_custom_call.1} parent=1 // loop_header_branch
      %15 = sbr.rel (%p13) target = $region8
    $region5: #{tpu_custom_call.1} parent=1 // loop_body
      %s17 = ssub.s32 %s12, 1
      %s18 = ssub.s32 %s12, 2
      %s25 = sadd.s32 1, %s20
      %p26 = scmp.ge.s32.totalorder %s25, 2
      %s27 = scalar_select %p26, 0, %s25
      %s28 = sadd.s32 1, %s19
      %s29 = scalar_select %p26, %s28, %s19
      %p30 = scmp.ge.s32.totalorder %s29, 2
      %s31 = scalar_select %p30, 0, %s29
      %s32 = ssub.s32 %s19, %s31
      %p33 = scmp.eq.s32.totalorder %s32, 0
      %s35 = sadd.s32 %s34, 1
      %s36 = scalar_select %p33, %s34, %s35
      %p39 = pneg %p33
      %p40 = scmp.eq.s32.totalorder %s12, 3
      %p41 = por %p39, %p40
      %p42 = scmp.ne.s32.totalorder %s34, %s37
      %p43 = scmp.eq.s32.totalorder %s12, 0
      %p44 = por %p42, %p43
      %p45 = scmp.ne.s32.totalorder %s34, %s37
      %p46 = scmp.eq.s32.totalorder %s17, 3
      %p47 = por %p45, %p46
      %p48 = scmp.ne.s32.totalorder %s37, %s38
      %p49 = scmp.eq.s32.totalorder %s17, 0
      %p50 = por %p48, %p49
      %p51 = scmp.ne.s32.totalorder %s37, %s38
      %p52 = scmp.eq.s32.totalorder %s18, 3
      %p53 = por %p51, %p52
      %p55 = scmp.ne.s32.totalorder %s38, %s54
      %p56 = scmp.eq.s32.totalorder %s18, 0
      %p57 = por %p55, %p56
      %s59 = sadd.s32 %s58, 1
      %p62 = scmp.eq.s32.totalorder %s12, 3
      %p63 = scmp.ne.s32.totalorder %s58, %s60
      %p64 = scmp.eq.s32.totalorder %s12, 0
      %p65 = por %p63, %p64
      %p66 = scmp.ne.s32.totalorder %s58, %s60
      %p67 = scmp.eq.s32.totalorder %s17, 3
      %p68 = por %p66, %p67
      %p69 = scmp.ne.s32.totalorder %s60, %s61
      %p70 = scmp.eq.s32.totalorder %s17, 0
      %p71 = por %p69, %p70
      %p72 = scmp.ne.s32.totalorder %s60, %s61
      %p73 = scmp.eq.s32.totalorder %s18, 3
      %p74 = por %p72, %p73
      %p76 = scmp.ne.s32.totalorder %s61, %s75
      %p77 = scmp.eq.s32.totalorder %s18, 0
      %p78 = por %p76, %p77
      %s80 = sadd.s32 %s79, 1
      %p83 = scmp.eq.s32.totalorder %s12, 3
      %p84 = scmp.ne.s32.totalorder %s79, %s81
      %p85 = scmp.eq.s32.totalorder %s12, 0
      %p86 = por %p84, %p85
      %p87 = scmp.ne.s32.totalorder %s79, %s81
      %p88 = scmp.eq.s32.totalorder %s17, 3
      %p89 = por %p87, %p88
      %p90 = scmp.ne.s32.totalorder %s81, %s82
      %p91 = scmp.eq.s32.totalorder %s17, 0
      %p92 = por %p90, %p91
      %p93 = scmp.ne.s32.totalorder %s81, %s82
      %p94 = scmp.eq.s32.totalorder %s18, 3
      %p95 = por %p93, %p94
      %p97 = scmp.ne.s32.totalorder %s82, %s96
      %p98 = scmp.eq.s32.totalorder %s18, 0
      %p99 = por %p97, %p98
      %s100 = ssub.s32 %s19, %s31
      %s101 = ssub.s32 %s20, %s27
      %s102 = sor.u32 %s100, %s101
      %p103 = scmp.eq.s32.totalorder %s102, 0
      %s105 = sadd.s32 %s104, 1
      %s106 = scalar_select %p103, %s104, %s105
      %p109 = pneg %p103
      %p110 = scmp.eq.s32.totalorder %s12, 3
      %p111 = por %p109, %p110
      %p112 = scmp.ne.s32.totalorder %s104, %s107
      %p113 = scmp.eq.s32.totalorder %s12, 0
      %p114 = por %p112, %p113
      %p115 = scmp.ne.s32.totalorder %s104, %s107
      %p116 = scmp.eq.s32.totalorder %s17, 3
      %p117 = por %p115, %p116
      %p118 = scmp.ne.s32.totalorder %s107, %s108
      %p119 = scmp.eq.s32.totalorder %s17, 0
      %p120 = por %p118, %p119
      %p121 = scmp.ne.s32.totalorder %s107, %s108
      %p122 = scmp.eq.s32.totalorder %s18, 3
      %p123 = por %p121, %p122
      %p125 = scmp.ne.s32.totalorder %s108, %s124
      %p126 = scmp.eq.s32.totalorder %s18, 0
      %p127 = por %p125, %p126
      %p128 = scmp.le.s32.totalorder 1, %s12
      %p129 = scmp.lt.s32.totalorder %s12, 5
      %p130 = pnand %p128, %p129
      %p131 = pneg %p130
      // Predicated region
      $region9: #{tpu_custom_call.1} parent=5 // pred_check
        _
      $region10: #{tpu_custom_call.1} parent=5 // pred_check_branch
        %133 = sbr.rel (%p130) target = $region12
      $region11: #{tpu_custom_call.1} parent=5 // pred_region
        %s134 = ssub.s32 %s12, 1
        // Predicated region
        $region13: #{tpu_custom_call.1} parent=11 // pred_check
          %p135 = pneg %p71
        $region14: #{tpu_custom_call.1} parent=11 // pred_check_branch
          %137 = sbr.rel (%p135) target = $region16
        $region15: #{tpu_custom_call.1} parent=11 // pred_region
          _
        $region16: #{tpu_custom_call.1} parent=11 // pred_fallthru
          _
        // Predicated region
        $region17: #{tpu_custom_call.1} parent=11 // pred_check
          %p138 = pneg %p92
        $region18: #{tpu_custom_call.1} parent=11 // pred_check_branch
          %140 = sbr.rel (%p138) target = $region20
        $region19: #{tpu_custom_call.1} parent=11 // pred_region
          _
        $region20: #{tpu_custom_call.1} parent=11 // pred_fallthru
          _
      $region12: #{tpu_custom_call.1} parent=5 // pred_fallthru
        _
      %p141 = scmp.lt.s32.totalorder %s12, 4
      // Predicated region
      $region21: #{tpu_custom_call.1} parent=5 // pred_check
        %p142 = pneg %p141
      $region22: #{tpu_custom_call.1} parent=5 // pred_check_branch
        %144 = sbr.rel (%p142) target = $region24
      $region23: #{tpu_custom_call.1} parent=5 // pred_region
        // Predicated region
        $region25: #{tpu_custom_call.1} parent=23 // pred_check
          %p145 = pneg %p44
        $region26: #{tpu_custom_call.1} parent=23 // pred_check_branch
          %147 = sbr.rel (%p145) target = $region28
        $region27: #{tpu_custom_call.1} parent=23 // pred_region
          %p148 = scmp.lt.s32.totalorder %s19, 1
          %s149 = scalar_select %p148, %s19, 1
          %s150 = smul.addr %s149, 54
          %s151 = smul.addr %s150, 8
          %s152 = scalar_lea.vmem %s0, %s151
        $region28: #{tpu_custom_call.1} parent=23 // pred_fallthru
          _
      $region24: #{tpu_custom_call.1} parent=5 // pred_fallthru
        _
      %p153 = scmp.le.s32.totalorder 1, %s12
      %p154 = scmp.lt.s32.totalorder %s12, 5
      %p155 = pnand %p153, %p154
      %p156 = pneg %p155
      // Predicated region
      $region29: #{tpu_custom_call.1} parent=5 // pred_check
        _
      $region30: #{tpu_custom_call.1} parent=5 // pred_check_branch
        %158 = sbr.rel (%p155) target = $region32
      $region31: #{tpu_custom_call.1} parent=5 // pred_region
        %s159 = ssub.s32 %s12, 1
        %p160 = scmp.lt.s32.totalorder %s21, 1
        %s161 = scalar_select %p160, %s21, 1
        %s162 = smul.addr %s161, 54
        %s163 = smul.addr %s162, 8
        %s164 = scalar_lea.vmem %s0, %s163
        %p165 = pneg %p50
        %p166 = pneg %p47
        %p167 = pneg %p71
        %p168 = pneg %p68
        %p169 = pneg %p92
        %p170 = pneg %p89
        %p171 = pneg %p120
        %p172 = pneg %p117
        %s173 = sand.u32 %s107, 1
        %s174 = scalar_lea.sflag [#allocation3], %s173
        %s175 = sand.u32 %s107, 1
        %s176 = smul.addr %s175, 128
        %s177 = scalar_lea.vmem [#allocation2], %s176
        %p178 = scmp.lt.s32.totalorder %s21, 1
        %s179 = scalar_select %p178, %s21, 1
        %s180 = smul.addr %s179, 54
        %s181 = smul.addr %s180, 8
        %s182 = scalar_lea.vmem %s0, %s181
        %s183 = smul.u32 8, %s22
        %s184 = smul.u32 %s22, 8
        %s185 = smul.u32 %s184, 24
        %s186 = scalar_lea.vmem %s182, %s185
        %v187 = vld [vmem:[%s186] sm:$0xff]
        %v188 = vld [vmem:[%s186 + $0x8] sm:$0xff]
        %v189 = vld [vmem:[%s186 + $0x18] sm:$0xff]
        %v190 = vld [vmem:[%s186 + $0x20] sm:$0xff]
        %v191 = vld [vmem:[%s186 + $0x30] sm:$0xff]
        %v192 = vld [vmem:[%s186 + $0x38] sm:$0xff]
        %v193 = vld [vmem:[%s186 + $0x48] sm:$0xff]
        %v194 = vld [vmem:[%s186 + $0x50] sm:$0xff]
        %v195 = vld [vmem:[%s186 + $0x60] sm:$0xff]
        %v196 = vld [vmem:[%s186 + $0x68] sm:$0xff]
        %v197 = vld [vmem:[%s186 + $0x78] sm:$0xff]
        %v198 = vld [vmem:[%s186 + $0x80] sm:$0xff]
        %v199 = vld [vmem:[%s186 + $0x90] sm:$0xff]
        %v200 = vld [vmem:[%s186 + $0x98] sm:$0xff]
        %v201 = vld [vmem:[%s186 + $0xa8] sm:$0xff]
        %v202 = vld [vmem:[%s186 + $0xb0] sm:$0xff]
        %v203 = vld [vmem:[%s186 + $0x1] sm:$0xff]
        %v204 = vld [vmem:[%s186 + $0x9] sm:$0xff]
        %v205 = vld [vmem:[%s186 + $0x19] sm:$0xff]
        %v206 = vld [vmem:[%s186 + $0x21] sm:$0xff]
        %v207 = vld [vmem:[%s186 + $0x31] sm:$0xff]
        %v208 = vld [vmem:[%s186 + $0x39] sm:$0xff]
        %v209 = vld [vmem:[%s186 + $0x49] sm:$0xff]
        %v210 = vld [vmem:[%s186 + $0x51] sm:$0xff]
        %v211 = vld [vmem:[%s186 + $0x61] sm:$0xff]
        %v212 = vld [vmem:[%s186 + $0x69] sm:$0xff]
        %v213 = vld [vmem:[%s186 + $0x79] sm:$0xff]
        %v214 = vld [vmem:[%s186 + $0x81] sm:$0xff]
        %v215 = vld [vmem:[%s186 + $0x91] sm:$0xff]
        %v216 = vld [vmem:[%s186 + $0x99] sm:$0xff]
        %v217 = vld [vmem:[%s186 + $0xa9] sm:$0xff]
        %v218 = vld [vmem:[%s186 + $0xb1] sm:$0xff]
        %v219 = vld [vmem:[%s186 + $0x2] sm:$0xff]
        %v220 = vld [vmem:[%s186 + $0xa] sm:$0xff]
        %v221 = vld [vmem:[%s186 + $0x1a] sm:$0xff]
        %v222 = vld [vmem:[%s186 + $0x22] sm:$0xff]
        %v223 = vld [vmem:[%s186 + $0x32] sm:$0xff]
        %v224 = vld [vmem:[%s186 + $0x3a] sm:$0xff]
        %v225 = vld [vmem:[%s186 + $0x4a] sm:$0xff]
        %v226 = vld [vmem:[%s186 + $0x52] sm:$0xff]
        %v227 = vld [vmem:[%s186 + $0x62] sm:$0xff]
        %v228 = vld [vmem:[%s186 + $0x6a] sm:$0xff]
        %v229 = vld [vmem:[%s186 + $0x7a] sm:$0xff]
        %v230 = vld [vmem:[%s186 + $0x82] sm:$0xff]
        %v231 = vld [vmem:[%s186 + $0x92] sm:$0xff]
        %v232 = vld [vmem:[%s186 + $0x9a] sm:$0xff]
        %v233 = vld [vmem:[%s186 + $0xaa] sm:$0xff]
        %v234 = vld [vmem:[%s186 + $0xb2] sm:$0xff]
        %s235 = sadd.s32 %s184, 1
        %s236 = smul.u32 %s235, 24
        %s237 = scalar_lea.vmem %s182, %s236
        %v238 = vld [vmem:[%s237] sm:$0xff]
        %v239 = vld [vmem:[%s237 + $0x8] sm:$0xff]
        %v240 = vld [vmem:[%s237 + $0x18] sm:$0xff]
        %v241 = vld [vmem:[%s237 + $0x20] sm:$0xff]
        %v242 = vld [vmem:[%s237 + $0x30] sm:$0xff]
        %v243 = vld [vmem:[%s237 + $0x38] sm:$0xff]
        %v244 = vld [vmem:[%s237 + $0x48] sm:$0xff]
        %v245 = vld [vmem:[%s237 + $0x50] sm:$0xff]
        %v246 = vld [vmem:[%s237 + $0x60] sm:$0xff]
        %v247 = vld [vmem:[%s237 + $0x68] sm:$0xff]
        %v248 = vld [vmem:[%s237 + $0x78] sm:$0xff]
        %v249 = vld [vmem:[%s237 + $0x80] sm:$0xff]
        %v250 = vld [vmem:[%s237 + $0x90] sm:$0xff]
        %v251 = vld [vmem:[%s237 + $0x98] sm:$0xff]
        %v252 = vld [vmem:[%s237 + $0xa8] sm:$0xff]
        %v253 = vld [vmem:[%s237 + $0xb0] sm:$0xff]
        %v254 = vld [vmem:[%s237 + $0x1] sm:$0xff]
        %v255 = vld [vmem:[%s237 + $0x9] sm:$0xff]
        %v256 = vld [vmem:[%s237 + $0x19] sm:$0xff]
        %v257 = vld [vmem:[%s237 + $0x21] sm:$0xff]
        %v258 = vld [vmem:[%s237 + $0x31] sm:$0xff]
        %v259 = vld [vmem:[%s237 + $0x39] sm:$0xff]
        %v260 = vld [vmem:[%s237 + $0x49] sm:$0xff]
        %v261 = vld [vmem:[%s237 + $0x51] sm:$0xff]
        %v262 = vld [vmem:[%s237 + $0x61] sm:$0xff]
        %v263 = vld [vmem:[%s237 + $0x69] sm:$0xff]
        %v264 = vld [vmem:[%s237 + $0x79] sm:$0xff]
        %v265 = vld [vmem:[%s237 + $0x81] sm:$0xff]
        %v266 = vld [vmem:[%s237 + $0x91] sm:$0xff]
        %v267 = vld [vmem:[%s237 + $0x99] sm:$0xff]
        %v268 = vld [vmem:[%s237 + $0xa9] sm:$0xff]
        %v269 = vld [vmem:[%s237 + $0xb1] sm:$0xff]
        %v270 = vld [vmem:[%s237 + $0x2] sm:$0xff]
        %v271 = vld [vmem:[%s237 + $0xa] sm:$0xff]
        %v272 = vld [vmem:[%s237 + $0x1a] sm:$0xff]
        %v273 = vld [vmem:[%s237 + $0x22] sm:$0xff]
        %v274 = vld [vmem:[%s237 + $0x32] sm:$0xff]
        %v275 = vld [vmem:[%s237 + $0x3a] sm:$0xff]
        %v276 = vld [vmem:[%s237 + $0x4a] sm:$0xff]
        %v277 = vld [vmem:[%s237 + $0x52] sm:$0xff]
        %v278 = vld [vmem:[%s237 + $0x62] sm:$0xff]
        %v279 = vld [vmem:[%s237 + $0x6a] sm:$0xff]
        %v280 = vld [vmem:[%s237 + $0x7a] sm:$0xff]
        %v281 = vld [vmem:[%s237 + $0x82] sm:$0xff]
        %v282 = vld [vmem:[%s237 + $0x92] sm:$0xff]
        %v283 = vld [vmem:[%s237 + $0x9a] sm:$0xff]
        %v284 = vld [vmem:[%s237 + $0xaa] sm:$0xff]
        %v285 = vld [vmem:[%s237 + $0xb2] sm:$0xff]
        %s286 = sadd.s32 %s184, 2
        %s287 = smul.u32 %s286, 24
        %s288 = scalar_lea.vmem %s182, %s287
        %v289 = vld [vmem:[%s288] sm:$0xff]
        %v290 = vld [vmem:[%s288 + $0x8] sm:$0xff]
        %v291 = vld [vmem:[%s288 + $0x18] sm:$0xff]
        %v292 = vld [vmem:[%s288 + $0x20] sm:$0xff]
        %v293 = vld [vmem:[%s288 + $0x30] sm:$0xff]
        %v294 = vld [vmem:[%s288 + $0x38] sm:$0xff]
        %v295 = vld [vmem:[%s288 + $0x48] sm:$0xff]
        %v296 = vld [vmem:[%s288 + $0x50] sm:$0xff]
        %v297 = vld [vmem:[%s288 + $0x60] sm:$0xff]
        %v298 = vld [vmem:[%s288 + $0x68] sm:$0xff]
        %v299 = vld [vmem:[%s288 + $0x78] sm:$0xff]
        %v300 = vld [vmem:[%s288 + $0x80] sm:$0xff]
        %v301 = vld [vmem:[%s288 + $0x90] sm:$0xff]
        %v302 = vld [vmem:[%s288 + $0x98] sm:$0xff]
        %v303 = vld [vmem:[%s288 + $0xa8] sm:$0xff]
        %v304 = vld [vmem:[%s288 + $0xb0] sm:$0xff]
        %v305 = vld [vmem:[%s288 + $0x1] sm:$0xff]
        %v306 = vld [vmem:[%s288 + $0x9] sm:$0xff]
        %v307 = vld [vmem:[%s288 + $0x19] sm:$0xff]
        %v308 = vld [vmem:[%s288 + $0x21] sm:$0xff]
        %v309 = vld [vmem:[%s288 + $0x31] sm:$0xff]
        %v310 = vld [vmem:[%s288 + $0x39] sm:$0xff]
        %v311 = vld [vmem:[%s288 + $0x49] sm:$0xff]
        %v312 = vld [vmem:[%s288 + $0x51] sm:$0xff]
        %v313 = vld [vmem:[%s288 + $0x61] sm:$0xff]
        %v314 = vld [vmem:[%s288 + $0x69] sm:$0xff]
        %v315 = vld [vmem:[%s288 + $0x79] sm:$0xff]
        %v316 = vld [vmem:[%s288 + $0x81] sm:$0xff]
        %v317 = vld [vmem:[%s288 + $0x91] sm:$0xff]
        %v318 = vld [vmem:[%s288 + $0x99] sm:$0xff]
        %v319 = vld [vmem:[%s288 + $0xa9] sm:$0xff]
        %v320 = vld [vmem:[%s288 + $0xb1] sm:$0xff]
        %v321 = vld [vmem:[%s288 + $0x2] sm:$0xff]
        %v322 = vld [vmem:[%s288 + $0xa] sm:$0xff]
        %v323 = vld [vmem:[%s288 + $0x1a] sm:$0xff]
        %v324 = vld [vmem:[%s288 + $0x22] sm:$0xff]
        %v325 = vld [vmem:[%s288 + $0x32] sm:$0xff]
        %v326 = vld [vmem:[%s288 + $0x3a] sm:$0xff]
        %v327 = vld [vmem:[%s288 + $0x4a] sm:$0xff]
        %v328 = vld [vmem:[%s288 + $0x52] sm:$0xff]
        %v329 = vld [vmem:[%s288 + $0x62] sm:$0xff]
        %v330 = vld [vmem:[%s288 + $0x6a] sm:$0xff]
        %v331 = vld [vmem:[%s288 + $0x7a] sm:$0xff]
        %v332 = vld [vmem:[%s288 + $0x82] sm:$0xff]
        %v333 = vld [vmem:[%s288 + $0x92] sm:$0xff]
        %v334 = vld [vmem:[%s288 + $0x9a] sm:$0xff]
        %v335 = vld [vmem:[%s288 + $0xaa] sm:$0xff]
        %v336 = vld [vmem:[%s288 + $0xb2] sm:$0xff]
        %v337 = vld [vmem:[%s1] sm:$0xff]
        %v338 = vld [vmem:[%s1 + $0x8] sm:$0xff]
        %v339 = vld [vmem:[%s1 + $0x10] sm:$0xff]
        %v340 = vld [vmem:[%s1 + $0x18] sm:$0xff]
        %v341 = vld [vmem:[%s1 + $0x20] sm:$0xff]
        %v342 = vld [vmem:[%s1 + $0x28] sm:$0xff]
        %v343 = vld [vmem:[%s1 + $0x30] sm:$0xff]
        %v344 = vld [vmem:[%s1 + $0x38] sm:$0xff]
        %v345 = vld [vmem:[%s1 + $0x40] sm:$0xff]
        %v346 = vld [vmem:[%s1 + $0x48] sm:$0xff]
        %v347 = vld [vmem:[%s1 + $0x50] sm:$0xff]
        %v348 = vld [vmem:[%s1 + $0x58] sm:$0xff]
        %v349 = vld [vmem:[%s1 + $0x60] sm:$0xff]
        %v350 = vld [vmem:[%s1 + $0x68] sm:$0xff]
        %v351 = vld [vmem:[%s1 + $0x70] sm:$0xff]
        %v352 = vld [vmem:[%s1 + $0x78] sm:$0xff]
        %v353 = vld [vmem:[%s1 + $0x80] sm:$0xff]
        %v354 = vld [vmem:[%s1 + $0x88] sm:$0xff]
        %v355 = vld [vmem:[%s1 + $0x90] sm:$0xff]
        %v356 = vld [vmem:[%s1 + $0x98] sm:$0xff]
        %v357 = vld [vmem:[%s1 + $0xa0] sm:$0xff]
        %v358 = vld [vmem:[%s1 + $0xa8] sm:$0xff]
        %v359 = vld [vmem:[%s1 + $0xb0] sm:$0xff]
        %v360 = vld [vmem:[%s1 + $0xb8] sm:$0xff]
        %v361 = vld [vmem:[%s1 + $0xc0] sm:$0xff]
        %v362 = vld [vmem:[%s1 + $0xc8] sm:$0xff]
        %v363 = vld [vmem:[%s1 + $0xd0] sm:$0xff]
        %v364 = vld [vmem:[%s1 + $0xd8] sm:$0xff]
        %v365 = vld [vmem:[%s1 + $0xe0] sm:$0xff]
        %v366 = vld [vmem:[%s1 + $0xe8] sm:$0xff]
        %v367 = vld [vmem:[%s1 + $0xf0] sm:$0xff]
        %v368 = vld [vmem:[%s1 + $0xf8] sm:$0xff]
        %v369 = vld [vmem:[%s1 + $0x100] sm:$0xff]
        %v370 = vld [vmem:[%s1 + $0x108] sm:$0xff]
        %v371 = vld [vmem:[%s1 + $0x110] sm:$0xff]
        %v372 = vld [vmem:[%s1 + $0x118] sm:$0xff]
        %v373 = vld [vmem:[%s1 + $0x120] sm:$0xff]
        %v374 = vld [vmem:[%s1 + $0x128] sm:$0xff]
        %v375 = vld [vmem:[%s1 + $0x130] sm:$0xff]
        %v376 = vld [vmem:[%s1 + $0x138] sm:$0xff]
        %v377 = vld [vmem:[%s1 + $0x140] sm:$0xff]
        %v378 = vld [vmem:[%s1 + $0x148] sm:$0xff]
        %v379 = vld [vmem:[%s1 + $0x150] sm:$0xff]
        %v380 = vld [vmem:[%s1 + $0x158] sm:$0xff]
        %v381 = vld [vmem:[%s1 + $0x160] sm:$0xff]
        %v382 = vld [vmem:[%s1 + $0x168] sm:$0xff]
        %v383 = vld [vmem:[%s1 + $0x170] sm:$0xff]
        %v384 = vld [vmem:[%s1 + $0x178] sm:$0xff]
        %v385 = vld [vmem:[%s1 + $0x180] sm:$0xff]
        %v386 = vld [vmem:[%s1 + $0x188] sm:$0xff]
        %v387 = vld [vmem:[%s1 + $0x190] sm:$0xff]
        %v388 = vld [vmem:[%s1 + $0x198] sm:$0xff]
        %v389 = vld [vmem:[%s1 + $0x1a0] sm:$0xff]
        %v390 = vld [vmem:[%s1 + $0x1a8] sm:$0xff]
        %v391 = vld [vmem:[%s1 + $0x1b0] sm:$0xff]
        %v392 = vld [vmem:[%s1 + $0x1b8] sm:$0xff]
        %v393 = vld [vmem:[%s1 + $0x1c0] sm:$0xff]
        %v394 = vld [vmem:[%s1 + $0x1c8] sm:$0xff]
        %v395 = vld [vmem:[%s1 + $0x1d0] sm:$0xff]
        %v396 = vld [vmem:[%s1 + $0x1d8] sm:$0xff]
        %v397 = vld [vmem:[%s1 + $0x1e0] sm:$0xff]
        %v398 = vld [vmem:[%s1 + $0x1e8] sm:$0xff]
        %v399 = vld [vmem:[%s1 + $0x1f0] sm:$0xff]
        %v400 = vld [vmem:[%s1 + $0x1f8] sm:$0xff]
        %v401 = vld [vmem:[%s1 + $0x200] sm:$0xff]
        %v402 = vld [vmem:[%s1 + $0x208] sm:$0xff]
        %v403 = vld [vmem:[%s1 + $0x210] sm:$0xff]
        %v404 = vld [vmem:[%s1 + $0x218] sm:$0xff]
        %v405 = vld [vmem:[%s1 + $0x220] sm:$0xff]
        %v406 = vld [vmem:[%s1 + $0x228] sm:$0xff]
        %v407 = vld [vmem:[%s1 + $0x230] sm:$0xff]
        %v408 = vld [vmem:[%s1 + $0x238] sm:$0xff]
        %v409 = vld [vmem:[%s1 + $0x240] sm:$0xff]
        %v410 = vld [vmem:[%s1 + $0x248] sm:$0xff]
        %v411 = vld [vmem:[%s1 + $0x250] sm:$0xff]
        %v412 = vld [vmem:[%s1 + $0x258] sm:$0xff]
        %v413 = vld [vmem:[%s1 + $0x260] sm:$0xff]
        %v414 = vld [vmem:[%s1 + $0x268] sm:$0xff]
        %v415 = vld [vmem:[%s1 + $0x270] sm:$0xff]
        %v416 = vld [vmem:[%s1 + $0x278] sm:$0xff]
        %v417 = vld [vmem:[%s1 + $0x280] sm:$0xff]
        %v418 = vld [vmem:[%s1 + $0x288] sm:$0xff]
        %v419 = vld [vmem:[%s1 + $0x290] sm:$0xff]
        %v420 = vld [vmem:[%s1 + $0x298] sm:$0xff]
        %v421 = vld [vmem:[%s1 + $0x2a0] sm:$0xff]
        %v422 = vld [vmem:[%s1 + $0x2a8] sm:$0xff]
        %v423 = vld [vmem:[%s1 + $0x2b0] sm:$0xff]
        %v424 = vld [vmem:[%s1 + $0x2b8] sm:$0xff]
        %v425 = vld [vmem:[%s1 + $0x2c0] sm:$0xff]
        %v426 = vld [vmem:[%s1 + $0x2c8] sm:$0xff]
        %v427 = vld [vmem:[%s1 + $0x2d0] sm:$0xff]
        %v428 = vld [vmem:[%s1 + $0x2d8] sm:$0xff]
        %v429 = vld [vmem:[%s1 + $0x2e0] sm:$0xff]
        %v430 = vld [vmem:[%s1 + $0x2e8] sm:$0xff]
        %v431 = vld [vmem:[%s1 + $0x2f0] sm:$0xff]
        %v432 = vld [vmem:[%s1 + $0x2f8] sm:$0xff]
        %v433 = vld [vmem:[%s1 + $0x300] sm:$0xff]
        %v434 = vld [vmem:[%s1 + $0x308] sm:$0xff]
        %v435 = vld [vmem:[%s1 + $0x310] sm:$0xff]
        %v436 = vld [vmem:[%s1 + $0x318] sm:$0xff]
        %v437 = vld [vmem:[%s1 + $0x320] sm:$0xff]
        %v438 = vld [vmem:[%s1 + $0x328] sm:$0xff]
        %v439 = vld [vmem:[%s1 + $0x330] sm:$0xff]
        %v440 = vld [vmem:[%s1 + $0x338] sm:$0xff]
        %v441 = vld [vmem:[%s1 + $0x340] sm:$0xff]
        %v442 = vld [vmem:[%s1 + $0x348] sm:$0xff]
        %v443 = vld [vmem:[%s1 + $0x350] sm:$0xff]
        %v444 = vld [vmem:[%s1 + $0x358] sm:$0xff]
        %v445 = vld [vmem:[%s1 + $0x360] sm:$0xff]
        %v446 = vld [vmem:[%s1 + $0x368] sm:$0xff]
        %v447 = vld [vmem:[%s1 + $0x370] sm:$0xff]
        %v448 = vld [vmem:[%s1 + $0x378] sm:$0xff]
        %v449 = vld [vmem:[%s1 + $0x380] sm:$0xff]
        %v450 = vld [vmem:[%s1 + $0x388] sm:$0xff]
        %v451 = vld [vmem:[%s1 + $0x390] sm:$0xff]
        %v452 = vld [vmem:[%s1 + $0x398] sm:$0xff]
        %v453 = vld [vmem:[%s1 + $0x3a0] sm:$0xff]
        %v454 = vld [vmem:[%s1 + $0x3a8] sm:$0xff]
        %v455 = vld [vmem:[%s1 + $0x3b0] sm:$0xff]
        %v456 = vld [vmem:[%s1 + $0x3b8] sm:$0xff]
        %v457 = vld [vmem:[%s1 + $0x3c0] sm:$0xff]
        %v458 = vld [vmem:[%s1 + $0x3c8] sm:$0xff]
        %v459 = vld [vmem:[%s1 + $0x3d0] sm:$0xff]
        %v460 = vld [vmem:[%s1 + $0x3d8] sm:$0xff]
        %v461 = vld [vmem:[%s1 + $0x3e0] sm:$0xff]
        %v462 = vld [vmem:[%s1 + $0x3e8] sm:$0xff]
        %v463 = vld [vmem:[%s1 + $0x3f0] sm:$0xff]
        %v464 = vld [vmem:[%s1 + $0x3f8] sm:$0xff]
        %v465 = vld [vmem:[%s1 + $0x400] sm:$0xff]
        %v466 = vld [vmem:[%s1 + $0x408] sm:$0xff]
        %v467 = vld [vmem:[%s1 + $0x410] sm:$0xff]
        %v468 = vld [vmem:[%s1 + $0x418] sm:$0xff]
        %v469 = vld [vmem:[%s1 + $0x420] sm:$0xff]
        %v470 = vld [vmem:[%s1 + $0x428] sm:$0xff]
        %v471 = vld [vmem:[%s1 + $0x430] sm:$0xff]
        %v472 = vld [vmem:[%s1 + $0x438] sm:$0xff]
        %v473 = vld [vmem:[%s1 + $0x440] sm:$0xff]
        %v474 = vld [vmem:[%s1 + $0x448] sm:$0xff]
        %v475 = vld [vmem:[%s1 + $0x450] sm:$0xff]
        %v476 = vld [vmem:[%s1 + $0x458] sm:$0xff]
        %v477 = vld [vmem:[%s1 + $0x460] sm:$0xff]
        %v478 = vld [vmem:[%s1 + $0x468] sm:$0xff]
        %v479 = vld [vmem:[%s1 + $0x470] sm:$0xff]
        %v480 = vld [vmem:[%s1 + $0x478] sm:$0xff]
        %v481 = vld [vmem:[%s2] sm:$0x1]
        %v483 = vperm.slane %v481, 0
        %485 = vmatpush.msra.mxu0 %v352
        %486 = vmatpush.msra.mxu0 %v351
        %487 = vmatpush.msra.mxu0 %v350
        %488 = vmatpush.msra.mxu0 %v349
        %489 = vmatpush.msra.mxu0 %v348
        %490 = vmatpush.msra.mxu0 %v347
        %491 = vmatpush.msra.mxu0 %v346
        %492 = vmatpush.msra.mxu0 %v345
        %493 = vmatpush.msra.mxu0 %v344
        %494 = vmatpush.msra.mxu0 %v343
        %495 = vmatpush.msra.mxu0 %v342
        %496 = vmatpush.msra.mxu0 %v341
        %497 = vmatpush.msra.mxu0 %v340
        %498 = vmatpush.msra.mxu0 %v339
        %499 = vmatpush.msra.mxu0 %v338
        %500 = vmatpush.msra.mxu0 %v337
        %501 = vmatmul.f32.gmra.mxu0 %v187
        %v502 = vpop.f32.mrf.mxu0
        %v503 = vadd.f32 %v483, %v502
        %504 = vmatmul.f32.gmra.mxu0 %v188
        %v505 = vpop.f32.mrf.mxu0
        %v506 = vadd.f32 %v483, %v505
        %507 = vmatmul.f32.gmra.mxu0 %v189
        %v508 = vpop.f32.mrf.mxu0
        %v509 = vadd.f32 %v483, %v508
        %510 = vmatmul.f32.gmra.mxu0 %v190
        %v511 = vpop.f32.mrf.mxu0
        %v512 = vadd.f32 %v483, %v511
        %513 = vmatmul.f32.gmra.mxu0 %v191
        %v514 = vpop.f32.mrf.mxu0
        %v515 = vadd.f32 %v483, %v514
        %516 = vmatmul.f32.gmra.mxu0 %v192
        %v517 = vpop.f32.mrf.mxu0
        %v518 = vadd.f32 %v483, %v517
        %519 = vmatmul.f32.gmra.mxu0 %v193
        %v520 = vpop.f32.mrf.mxu0
        %v521 = vadd.f32 %v483, %v520
        %522 = vmatmul.f32.gmra.mxu0 %v194
        %v523 = vpop.f32.mrf.mxu0
        %v524 = vadd.f32 %v483, %v523
        %525 = vmatmul.f32.gmra.mxu0 %v195
        %v526 = vpop.f32.mrf.mxu0
        %v527 = vadd.f32 %v483, %v526
        %528 = vmatmul.f32.gmra.mxu0 %v196
        %v529 = vpop.f32.mrf.mxu0
        %v530 = vadd.f32 %v483, %v529
        %531 = vmatmul.f32.gmra.mxu0 %v197
        %v532 = vpop.f32.mrf.mxu0
        %v533 = vadd.f32 %v483, %v532
        %534 = vmatmul.f32.gmra.mxu0 %v198
        %v535 = vpop.f32.mrf.mxu0
        %v536 = vadd.f32 %v483, %v535
        %537 = vmatmul.f32.gmra.mxu0 %v199
        %v538 = vpop.f32.mrf.mxu0
        %v539 = vadd.f32 %v483, %v538
        %540 = vmatmul.f32.gmra.mxu0 %v200
        %v541 = vpop.f32.mrf.mxu0
        %v542 = vadd.f32 %v483, %v541
        %543 = vmatmul.f32.gmra.mxu0 %v201
        %v544 = vpop.f32.mrf.mxu0
        %v545 = vadd.f32 %v483, %v544
        %546 = vmatmul.f32.gmra.mxu0 %v202
        %v547 = vpop.f32.mrf.mxu0
        %v548 = vadd.f32 %v483, %v547
        %549 = vdwg.mxu0
        %550 = vmatpush.msra.mxu0 %v368
        %551 = vmatpush.msra.mxu0 %v367
        %552 = vmatpush.msra.mxu0 %v366
        %553 = vmatpush.msra.mxu0 %v365
        %554 = vmatpush.msra.mxu0 %v364
        %555 = vmatpush.msra.mxu0 %v363
        %556 = vmatpush.msra.mxu0 %v362
        %557 = vmatpush.msra.mxu0 %v361
        %558 = vmatpush.msra.mxu0 %v360
        %559 = vmatpush.msra.mxu0 %v359
        %560 = vmatpush.msra.mxu0 %v358
        %561 = vmatpush.msra.mxu0 %v357
        %562 = vmatpush.msra.mxu0 %v356
        %563 = vmatpush.msra.mxu0 %v355
        %564 = vmatpush.msra.mxu0 %v354
        %565 = vmatpush.msra.mxu0 %v353
        %566 = vmatmul.f32.gmra.mxu0 %v203
        %v567 = vpop.f32.mrf.mxu0
        %v568 = vadd.f32 %v503, %v567
        %569 = vmatmul.f32.gmra.mxu0 %v204
        %v570 = vpop.f32.mrf.mxu0
        %v571 = vadd.f32 %v506, %v570
        %572 = vmatmul.f32.gmra.mxu0 %v205
        %v573 = vpop.f32.mrf.mxu0
        %v574 = vadd.f32 %v509, %v573
        %575 = vmatmul.f32.gmra.mxu0 %v206
        %v576 = vpop.f32.mrf.mxu0
        %v577 = vadd.f32 %v512, %v576
        %578 = vmatmul.f32.gmra.mxu0 %v207
        %v579 = vpop.f32.mrf.mxu0
        %v580 = vadd.f32 %v515, %v579
        %581 = vmatmul.f32.gmra.mxu0 %v208
        %v582 = vpop.f32.mrf.mxu0
        %v583 = vadd.f32 %v518, %v582
        %584 = vmatmul.f32.gmra.mxu0 %v209
        %v585 = vpop.f32.mrf.mxu0
        %v586 = vadd.f32 %v521, %v585
        %587 = vmatmul.f32.gmra.mxu0 %v210
        %v588 = vpop.f32.mrf.mxu0
        %v589 = vadd.f32 %v524, %v588
        %590 = vmatmul.f32.gmra.mxu0 %v211
        %v591 = vpop.f32.mrf.mxu0
        %v592 = vadd.f32 %v527, %v591
        %593 = vmatmul.f32.gmra.mxu0 %v212
        %v594 = vpop.f32.mrf.mxu0
        %v595 = vadd.f32 %v530, %v594
        %596 = vmatmul.f32.gmra.mxu0 %v213
        %v597 = vpop.f32.mrf.mxu0
        %v598 = vadd.f32 %v533, %v597
        %599 = vmatmul.f32.gmra.mxu0 %v214
        %v600 = vpop.f32.mrf.mxu0
        %v601 = vadd.f32 %v536, %v600
        %602 = vmatmul.f32.gmra.mxu0 %v215
        %v603 = vpop.f32.mrf.mxu0
        %v604 = vadd.f32 %v539, %v603
        %605 = vmatmul.f32.gmra.mxu0 %v216
        %v606 = vpop.f32.mrf.mxu0
        %v607 = vadd.f32 %v542, %v606
        %608 = vmatmul.f32.gmra.mxu0 %v217
        %v609 = vpop.f32.mrf.mxu0
        %v610 = vadd.f32 %v545, %v609
        %611 = vmatmul.f32.gmra.mxu0 %v218
        %v612 = vpop.f32.mrf.mxu0
        %v613 = vadd.f32 %v548, %v612
        %614 = vdwg.mxu0
        %615 = vmatpush.msra.mxu0 %v384
        %616 = vmatpush.msra.mxu0 %v383
        %617 = vmatpush.msra.mxu0 %v382
        %618 = vmatpush.msra.mxu0 %v381
        %619 = vmatpush.msra.mxu0 %v380
        %620 = vmatpush.msra.mxu0 %v379
        %621 = vmatpush.msra.mxu0 %v378
        %622 = vmatpush.msra.mxu0 %v377
        %623 = vmatpush.msra.mxu0 %v376
        %624 = vmatpush.msra.mxu0 %v375
        %625 = vmatpush.msra.mxu0 %v374
        %626 = vmatpush.msra.mxu0 %v373
        %627 = vmatpush.msra.mxu0 %v372
        %628 = vmatpush.msra.mxu0 %v371
        %629 = vmatpush.msra.mxu0 %v370
        %630 = vmatpush.msra.mxu0 %v369
        %631 = vmatmul.f32.gmra.mxu0 %v219
        %v632 = vpop.f32.mrf.mxu0
        %v633 = vadd.f32 %v568, %v632
        %634 = vmatmul.f32.gmra.mxu0 %v220
        %v635 = vpop.f32.mrf.mxu0
        %v636 = vadd.f32 %v571, %v635
        %637 = vmatmul.f32.gmra.mxu0 %v221
        %v638 = vpop.f32.mrf.mxu0
        %v639 = vadd.f32 %v574, %v638
        %640 = vmatmul.f32.gmra.mxu0 %v222
        %v641 = vpop.f32.mrf.mxu0
        %v642 = vadd.f32 %v577, %v641
        %643 = vmatmul.f32.gmra.mxu0 %v223
        %v644 = vpop.f32.mrf.mxu0
        %v645 = vadd.f32 %v580, %v644
        %646 = vmatmul.f32.gmra.mxu0 %v224
        %v647 = vpop.f32.mrf.mxu0
        %v648 = vadd.f32 %v583, %v647
        %649 = vmatmul.f32.gmra.mxu0 %v225
        %v650 = vpop.f32.mrf.mxu0
        %v651 = vadd.f32 %v586, %v650
        %652 = vmatmul.f32.gmra.mxu0 %v226
        %v653 = vpop.f32.mrf.mxu0
        %v654 = vadd.f32 %v589, %v653
        %655 = vmatmul.f32.gmra.mxu0 %v227
        %v656 = vpop.f32.mrf.mxu0
        %v657 = vadd.f32 %v592, %v656
        %658 = vmatmul.f32.gmra.mxu0 %v228
        %v659 = vpop.f32.mrf.mxu0
        %v660 = vadd.f32 %v595, %v659
        %661 = vmatmul.f32.gmra.mxu0 %v229
        %v662 = vpop.f32.mrf.mxu0
        %v663 = vadd.f32 %v598, %v662
        %664 = vmatmul.f32.gmra.mxu0 %v230
        %v665 = vpop.f32.mrf.mxu0
        %v666 = vadd.f32 %v601, %v665
        %667 = vmatmul.f32.gmra.mxu0 %v231
        %v668 = vpop.f32.mrf.mxu0
        %v669 = vadd.f32 %v604, %v668
        %670 = vmatmul.f32.gmra.mxu0 %v232
        %v671 = vpop.f32.mrf.mxu0
        %v672 = vadd.f32 %v607, %v671
        %673 = vmatmul.f32.gmra.mxu0 %v233
        %v674 = vpop.f32.mrf.mxu0
        %v675 = vadd.f32 %v610, %v674
        %676 = vmatmul.f32.gmra.mxu0 %v234
        %v677 = vpop.f32.mrf.mxu0
        %v678 = vadd.f32 %v613, %v677
        %679 = vdwg.mxu0
        %680 = vmatpush.msra.mxu0 %v400
        %681 = vmatpush.msra.mxu0 %v399
        %682 = vmatpush.msra.mxu0 %v398
        %683 = vmatpush.msra.mxu0 %v397
        %684 = vmatpush.msra.mxu0 %v396
        %685 = vmatpush.msra.mxu0 %v395
        %686 = vmatpush.msra.mxu0 %v394
        %687 = vmatpush.msra.mxu0 %v393
        %688 = vmatpush.msra.mxu0 %v392
        %689 = vmatpush.msra.mxu0 %v391
        %690 = vmatpush.msra.mxu0 %v390
        %691 = vmatpush.msra.mxu0 %v389
        %692 = vmatpush.msra.mxu0 %v388
        %693 = vmatpush.msra.mxu0 %v387
        %694 = vmatpush.msra.mxu0 %v386
        %695 = vmatpush.msra.mxu0 %v385
        %696 = vmatmul.f32.gmra.mxu0 %v238
        %v697 = vpop.f32.mrf.mxu0
        %v698 = vadd.f32 %v633, %v697
        %699 = vmatmul.f32.gmra.mxu0 %v239
        %v700 = vpop.f32.mrf.mxu0
        %v701 = vadd.f32 %v636, %v700
        %702 = vmatmul.f32.gmra.mxu0 %v240
        %v703 = vpop.f32.mrf.mxu0
        %v704 = vadd.f32 %v639, %v703
        %705 = vmatmul.f32.gmra.mxu0 %v241
        %v706 = vpop.f32.mrf.mxu0
        %v707 = vadd.f32 %v642, %v706
        %708 = vmatmul.f32.gmra.mxu0 %v242
        %v709 = vpop.f32.mrf.mxu0
        %v710 = vadd.f32 %v645, %v709
        %711 = vmatmul.f32.gmra.mxu0 %v243
        %v712 = vpop.f32.mrf.mxu0
        %v713 = vadd.f32 %v648, %v712
        %714 = vmatmul.f32.gmra.mxu0 %v244
        %v715 = vpop.f32.mrf.mxu0
        %v716 = vadd.f32 %v651, %v715
        %717 = vmatmul.f32.gmra.mxu0 %v245
        %v718 = vpop.f32.mrf.mxu0
        %v719 = vadd.f32 %v654, %v718
        %720 = vmatmul.f32.gmra.mxu0 %v246
        %v721 = vpop.f32.mrf.mxu0
        %v722 = vadd.f32 %v657, %v721
        %723 = vmatmul.f32.gmra.mxu0 %v247
        %v724 = vpop.f32.mrf.mxu0
        %v725 = vadd.f32 %v660, %v724
        %726 = vmatmul.f32.gmra.mxu0 %v248
        %v727 = vpop.f32.mrf.mxu0
        %v728 = vadd.f32 %v663, %v727
        %729 = vmatmul.f32.gmra.mxu0 %v249
        %v730 = vpop.f32.mrf.mxu0
        %v731 = vadd.f32 %v666, %v730
        %732 = vmatmul.f32.gmra.mxu0 %v250
        %v733 = vpop.f32.mrf.mxu0
        %v734 = vadd.f32 %v669, %v733
        %735 = vmatmul.f32.gmra.mxu0 %v251
        %v736 = vpop.f32.mrf.mxu0
        %v737 = vadd.f32 %v672, %v736
        %738 = vmatmul.f32.gmra.mxu0 %v252
        %v739 = vpop.f32.mrf.mxu0
        %v740 = vadd.f32 %v675, %v739
        %741 = vmatmul.f32.gmra.mxu0 %v253
        %v742 = vpop.f32.mrf.mxu0
        %v743 = vadd.f32 %v678, %v742
        %744 = vdwg.mxu0
        %745 = vmatpush.msra.mxu0 %v416
        %746 = vmatpush.msra.mxu0 %v415
        %747 = vmatpush.msra.mxu0 %v414
        %748 = vmatpush.msra.mxu0 %v413
        %749 = vmatpush.msra.mxu0 %v412
        %750 = vmatpush.msra.mxu0 %v411
        %751 = vmatpush.msra.mxu0 %v410
        %752 = vmatpush.msra.mxu0 %v409
        %753 = vmatpush.msra.mxu0 %v408
        %754 = vmatpush.msra.mxu0 %v407
        %755 = vmatpush.msra.mxu0 %v406
        %756 = vmatpush.msra.mxu0 %v405
        %757 = vmatpush.msra.mxu0 %v404
        %758 = vmatpush.msra.mxu0 %v403
        %759 = vmatpush.msra.mxu0 %v402
        %760 = vmatpush.msra.mxu0 %v401
        %761 = vmatmul.f32.gmra.mxu0 %v254
        %v762 = vpop.f32.mrf.mxu0
        %v763 = vadd.f32 %v698, %v762
        %764 = vmatmul.f32.gmra.mxu0 %v255
        %v765 = vpop.f32.mrf.mxu0
        %v766 = vadd.f32 %v701, %v765
        %767 = vmatmul.f32.gmra.mxu0 %v256
        %v768 = vpop.f32.mrf.mxu0
        %v769 = vadd.f32 %v704, %v768
        %770 = vmatmul.f32.gmra.mxu0 %v257
        %v771 = vpop.f32.mrf.mxu0
        %v772 = vadd.f32 %v707, %v771
        %773 = vmatmul.f32.gmra.mxu0 %v258
        %v774 = vpop.f32.mrf.mxu0
        %v775 = vadd.f32 %v710, %v774
        %776 = vmatmul.f32.gmra.mxu0 %v259
        %v777 = vpop.f32.mrf.mxu0
        %v778 = vadd.f32 %v713, %v777
        %779 = vmatmul.f32.gmra.mxu0 %v260
        %v780 = vpop.f32.mrf.mxu0
        %v781 = vadd.f32 %v716, %v780
        %782 = vmatmul.f32.gmra.mxu0 %v261
        %v783 = vpop.f32.mrf.mxu0
        %v784 = vadd.f32 %v719, %v783
        %785 = vmatmul.f32.gmra.mxu0 %v262
        %v786 = vpop.f32.mrf.mxu0
        %v787 = vadd.f32 %v722, %v786
        %788 = vmatmul.f32.gmra.mxu0 %v263
        %v789 = vpop.f32.mrf.mxu0
        %v790 = vadd.f32 %v725, %v789
        %791 = vmatmul.f32.gmra.mxu0 %v264
        %v792 = vpop.f32.mrf.mxu0
        %v793 = vadd.f32 %v728, %v792
        %794 = vmatmul.f32.gmra.mxu0 %v265
        %v795 = vpop.f32.mrf.mxu0
        %v796 = vadd.f32 %v731, %v795
        %797 = vmatmul.f32.gmra.mxu0 %v266
        %v798 = vpop.f32.mrf.mxu0
        %v799 = vadd.f32 %v734, %v798
        %800 = vmatmul.f32.gmra.mxu0 %v267
        %v801 = vpop.f32.mrf.mxu0
        %v802 = vadd.f32 %v737, %v801
        %803 = vmatmul.f32.gmra.mxu0 %v268
        %v804 = vpop.f32.mrf.mxu0
        %v805 = vadd.f32 %v740, %v804
        %806 = vmatmul.f32.gmra.mxu0 %v269
        %v807 = vpop.f32.mrf.mxu0
        %v808 = vadd.f32 %v743, %v807
        %809 = vdwg.mxu0
        %810 = vmatpush.msra.mxu0 %v432
        %811 = vmatpush.msra.mxu0 %v431
        %812 = vmatpush.msra.mxu0 %v430
        %813 = vmatpush.msra.mxu0 %v429
        %814 = vmatpush.msra.mxu0 %v428
        %815 = vmatpush.msra.mxu0 %v427
        %816 = vmatpush.msra.mxu0 %v426
        %817 = vmatpush.msra.mxu0 %v425
        %818 = vmatpush.msra.mxu0 %v424
        %819 = vmatpush.msra.mxu0 %v423
        %820 = vmatpush.msra.mxu0 %v422
        %821 = vmatpush.msra.mxu0 %v421
        %822 = vmatpush.msra.mxu0 %v420
        %823 = vmatpush.msra.mxu0 %v419
        %824 = vmatpush.msra.mxu0 %v418
        %825 = vmatpush.msra.mxu0 %v417
        %826 = vmatmul.f32.gmra.mxu0 %v270
        %v827 = vpop.f32.mrf.mxu0
        %v828 = vadd.f32 %v763, %v827
        %829 = vmatmul.f32.gmra.mxu0 %v271
        %v830 = vpop.f32.mrf.mxu0
        %v831 = vadd.f32 %v766, %v830
        %832 = vmatmul.f32.gmra.mxu0 %v272
        %v833 = vpop.f32.mrf.mxu0
        %v834 = vadd.f32 %v769, %v833
        %835 = vmatmul.f32.gmra.mxu0 %v273
        %v836 = vpop.f32.mrf.mxu0
        %v837 = vadd.f32 %v772, %v836
        %838 = vmatmul.f32.gmra.mxu0 %v274
        %v839 = vpop.f32.mrf.mxu0
        %v840 = vadd.f32 %v775, %v839
        %841 = vmatmul.f32.gmra.mxu0 %v275
        %v842 = vpop.f32.mrf.mxu0
        %v843 = vadd.f32 %v778, %v842
        %844 = vmatmul.f32.gmra.mxu0 %v276
        %v845 = vpop.f32.mrf.mxu0
        %v846 = vadd.f32 %v781, %v845
        %847 = vmatmul.f32.gmra.mxu0 %v277
        %v848 = vpop.f32.mrf.mxu0
        %v849 = vadd.f32 %v784, %v848
        %850 = vmatmul.f32.gmra.mxu0 %v278
        %v851 = vpop.f32.mrf.mxu0
        %v852 = vadd.f32 %v787, %v851
        %853 = vmatmul.f32.gmra.mxu0 %v279
        %v854 = vpop.f32.mrf.mxu0
        %v855 = vadd.f32 %v790, %v854
        %856 = vmatmul.f32.gmra.mxu0 %v280
        %v857 = vpop.f32.mrf.mxu0
        %v858 = vadd.f32 %v793, %v857
        %859 = vmatmul.f32.gmra.mxu0 %v281
        %v860 = vpop.f32.mrf.mxu0
        %v861 = vadd.f32 %v796, %v860
        %862 = vmatmul.f32.gmra.mxu0 %v282
        %v863 = vpop.f32.mrf.mxu0
        %v864 = vadd.f32 %v799, %v863
        %865 = vmatmul.f32.gmra.mxu0 %v283
        %v866 = vpop.f32.mrf.mxu0
        %v867 = vadd.f32 %v802, %v866
        %868 = vmatmul.f32.gmra.mxu0 %v284
        %v869 = vpop.f32.mrf.mxu0
        %v870 = vadd.f32 %v805, %v869
        %871 = vmatmul.f32.gmra.mxu0 %v285
        %v872 = vpop.f32.mrf.mxu0
        %v873 = vadd.f32 %v808, %v872
        %874 = vdwg.mxu0
        %875 = vmatpush.msra.mxu0 %v448
        %876 = vmatpush.msra.mxu0 %v447
        %877 = vmatpush.msra.mxu0 %v446
        %878 = vmatpush.msra.mxu0 %v445
        %879 = vmatpush.msra.mxu0 %v444
        %880 = vmatpush.msra.mxu0 %v443
        %881 = vmatpush.msra.mxu0 %v442
        %882 = vmatpush.msra.mxu0 %v441
        %883 = vmatpush.msra.mxu0 %v440
        %884 = vmatpush.msra.mxu0 %v439
        %885 = vmatpush.msra.mxu0 %v438
        %886 = vmatpush.msra.mxu0 %v437
        %887 = vmatpush.msra.mxu0 %v436
        %888 = vmatpush.msra.mxu0 %v435
        %889 = vmatpush.msra.mxu0 %v434
        %890 = vmatpush.msra.mxu0 %v433
        %891 = vmatmul.f32.gmra.mxu0 %v289
        %v892 = vpop.f32.mrf.mxu0
        %v893 = vadd.f32 %v828, %v892
        %894 = vmatmul.f32.gmra.mxu0 %v290
        %v895 = vpop.f32.mrf.mxu0
        %v896 = vadd.f32 %v831, %v895
        %897 = vmatmul.f32.gmra.mxu0 %v291
        %v898 = vpop.f32.mrf.mxu0
        %v899 = vadd.f32 %v834, %v898
        %900 = vmatmul.f32.gmra.mxu0 %v292
        %v901 = vpop.f32.mrf.mxu0
        %v902 = vadd.f32 %v837, %v901
        %903 = vmatmul.f32.gmra.mxu0 %v293
        %v904 = vpop.f32.mrf.mxu0
        %v905 = vadd.f32 %v840, %v904
        %906 = vmatmul.f32.gmra.mxu0 %v294
        %v907 = vpop.f32.mrf.mxu0
        %v908 = vadd.f32 %v843, %v907
        %909 = vmatmul.f32.gmra.mxu0 %v295
        %v910 = vpop.f32.mrf.mxu0
        %v911 = vadd.f32 %v846, %v910
        %912 = vmatmul.f32.gmra.mxu0 %v296
        %v913 = vpop.f32.mrf.mxu0
        %v914 = vadd.f32 %v849, %v913
        %915 = vmatmul.f32.gmra.mxu0 %v297
        %v916 = vpop.f32.mrf.mxu0
        %v917 = vadd.f32 %v852, %v916
        %918 = vmatmul.f32.gmra.mxu0 %v298
        %v919 = vpop.f32.mrf.mxu0
        %v920 = vadd.f32 %v855, %v919
        %921 = vmatmul.f32.gmra.mxu0 %v299
        %v922 = vpop.f32.mrf.mxu0
        %v923 = vadd.f32 %v858, %v922
        %924 = vmatmul.f32.gmra.mxu0 %v300
        %v925 = vpop.f32.mrf.mxu0
        %v926 = vadd.f32 %v861, %v925
        %927 = vmatmul.f32.gmra.mxu0 %v301
        %v928 = vpop.f32.mrf.mxu0
        %v929 = vadd.f32 %v864, %v928
        %930 = vmatmul.f32.gmra.mxu0 %v302
        %v931 = vpop.f32.mrf.mxu0
        %v932 = vadd.f32 %v867, %v931
        %933 = vmatmul.f32.gmra.mxu0 %v303
        %v934 = vpop.f32.mrf.mxu0
        %v935 = vadd.f32 %v870, %v934
        %936 = vmatmul.f32.gmra.mxu0 %v304
        %v937 = vpop.f32.mrf.mxu0
        %v938 = vadd.f32 %v873, %v937
        %939 = vdwg.mxu0
        %940 = vmatpush.msra.mxu0 %v464
        %941 = vmatpush.msra.mxu0 %v463
        %942 = vmatpush.msra.mxu0 %v462
        %943 = vmatpush.msra.mxu0 %v461
        %944 = vmatpush.msra.mxu0 %v460
        %945 = vmatpush.msra.mxu0 %v459
        %946 = vmatpush.msra.mxu0 %v458
        %947 = vmatpush.msra.mxu0 %v457
        %948 = vmatpush.msra.mxu0 %v456
        %949 = vmatpush.msra.mxu0 %v455
        %950 = vmatpush.msra.mxu0 %v454
        %951 = vmatpush.msra.mxu0 %v453
        %952 = vmatpush.msra.mxu0 %v452
        %953 = vmatpush.msra.mxu0 %v451
        %954 = vmatpush.msra.mxu0 %v450
        %955 = vmatpush.msra.mxu0 %v449
        %956 = vmatmul.f32.gmra.mxu0 %v305
        %v957 = vpop.f32.mrf.mxu0
        %v958 = vadd.f32 %v893, %v957
        %959 = vmatmul.f32.gmra.mxu0 %v306
        %v960 = vpop.f32.mrf.mxu0
        %v961 = vadd.f32 %v896, %v960
        %962 = vmatmul.f32.gmra.mxu0 %v307
        %v963 = vpop.f32.mrf.mxu0
        %v964 = vadd.f32 %v899, %v963
        %965 = vmatmul.f32.gmra.mxu0 %v308
        %v966 = vpop.f32.mrf.mxu0
        %v967 = vadd.f32 %v902, %v966
        %968 = vmatmul.f32.gmra.mxu0 %v309
        %v969 = vpop.f32.mrf.mxu0
        %v970 = vadd.f32 %v905, %v969
        %971 = vmatmul.f32.gmra.mxu0 %v310
        %v972 = vpop.f32.mrf.mxu0
        %v973 = vadd.f32 %v908, %v972
        %974 = vmatmul.f32.gmra.mxu0 %v311
        %v975 = vpop.f32.mrf.mxu0
        %v976 = vadd.f32 %v911, %v975
        %977 = vmatmul.f32.gmra.mxu0 %v312
        %v978 = vpop.f32.mrf.mxu0
        %v979 = vadd.f32 %v914, %v978
        %980 = vmatmul.f32.gmra.mxu0 %v313
        %v981 = vpop.f32.mrf.mxu0
        %v982 = vadd.f32 %v917, %v981
        %983 = vmatmul.f32.gmra.mxu0 %v314
        %v984 = vpop.f32.mrf.mxu0
        %v985 = vadd.f32 %v920, %v984
        %986 = vmatmul.f32.gmra.mxu0 %v315
        %v987 = vpop.f32.mrf.mxu0
        %v988 = vadd.f32 %v923, %v987
        %989 = vmatmul.f32.gmra.mxu0 %v316
        %v990 = vpop.f32.mrf.mxu0
        %v991 = vadd.f32 %v926, %v990
        %992 = vmatmul.f32.gmra.mxu0 %v317
        %v993 = vpop.f32.mrf.mxu0
        %v994 = vadd.f32 %v929, %v993
        %995 = vmatmul.f32.gmra.mxu0 %v318
        %v996 = vpop.f32.mrf.mxu0
        %v997 = vadd.f32 %v932, %v996
        %998 = vmatmul.f32.gmra.mxu0 %v319
        %v999 = vpop.f32.mrf.mxu0
        %v1000 = vadd.f32 %v935, %v999
        %1001 = vmatmul.f32.gmra.mxu0 %v320
        %v1002 = vpop.f32.mrf.mxu0
        %v1003 = vadd.f32 %v938, %v1002
        %1004 = vdwg.mxu0
        %1005 = vmatpush.msra.mxu0 %v480
        %1006 = vmatpush.msra.mxu0 %v479
        %1007 = vmatpush.msra.mxu0 %v478
        %1008 = vmatpush.msra.mxu0 %v477
        %1009 = vmatpush.msra.mxu0 %v476
        %1010 = vmatpush.msra.mxu0 %v475
        %1011 = vmatpush.msra.mxu0 %v474
        %1012 = vmatpush.msra.mxu0 %v473
        %1013 = vmatpush.msra.mxu0 %v472
        %1014 = vmatpush.msra.mxu0 %v471
        %1015 = vmatpush.msra.mxu0 %v470
        %1016 = vmatpush.msra.mxu0 %v469
        %1017 = vmatpush.msra.mxu0 %v468
        %1018 = vmatpush.msra.mxu0 %v467
        %1019 = vmatpush.msra.mxu0 %v466
        %1020 = vmatpush.msra.mxu0 %v465
        %1021 = vmatmul.f32.gmra.mxu0 %v321
        %v1022 = vpop.f32.mrf.mxu0
        %v1023 = vadd.f32 %v958, %v1022
        %1024 = vmatmul.f32.gmra.mxu0 %v322
        %v1025 = vpop.f32.mrf.mxu0
        %v1026 = vadd.f32 %v961, %v1025
        %1027 = vmatmul.f32.gmra.mxu0 %v323
        %v1028 = vpop.f32.mrf.mxu0
        %v1029 = vadd.f32 %v964, %v1028
        %1030 = vmatmul.f32.gmra.mxu0 %v324
        %v1031 = vpop.f32.mrf.mxu0
        %v1032 = vadd.f32 %v967, %v1031
        %1033 = vmatmul.f32.gmra.mxu0 %v325
        %v1034 = vpop.f32.mrf.mxu0
        %v1035 = vadd.f32 %v970, %v1034
        %1036 = vmatmul.f32.gmra.mxu0 %v326
        %v1037 = vpop.f32.mrf.mxu0
        %v1038 = vadd.f32 %v973, %v1037
        %1039 = vmatmul.f32.gmra.mxu0 %v327
        %v1040 = vpop.f32.mrf.mxu0
        %v1041 = vadd.f32 %v976, %v1040
        %1042 = vmatmul.f32.gmra.mxu0 %v328
        %v1043 = vpop.f32.mrf.mxu0
        %v1044 = vadd.f32 %v979, %v1043
        %1045 = vmatmul.f32.gmra.mxu0 %v329
        %v1046 = vpop.f32.mrf.mxu0
        %v1047 = vadd.f32 %v982, %v1046
        %1048 = vmatmul.f32.gmra.mxu0 %v330
        %v1049 = vpop.f32.mrf.mxu0
        %v1050 = vadd.f32 %v985, %v1049
        %1051 = vmatmul.f32.gmra.mxu0 %v331
        %v1052 = vpop.f32.mrf.mxu0
        %v1053 = vadd.f32 %v988, %v1052
        %1054 = vmatmul.f32.gmra.mxu0 %v332
        %v1055 = vpop.f32.mrf.mxu0
        %v1056 = vadd.f32 %v991, %v1055
        %1057 = vmatmul.f32.gmra.mxu0 %v333
        %v1058 = vpop.f32.mrf.mxu0
        %v1059 = vadd.f32 %v994, %v1058
        %1060 = vmatmul.f32.gmra.mxu0 %v334
        %v1061 = vpop.f32.mrf.mxu0
        %v1062 = vadd.f32 %v997, %v1061
        %1063 = vmatmul.f32.gmra.mxu0 %v335
        %v1064 = vpop.f32.mrf.mxu0
        %v1065 = vadd.f32 %v1000, %v1064
        %1066 = vmatmul.f32.gmra.mxu0 %v336
        %v1067 = vpop.f32.mrf.mxu0
        %v1068 = vadd.f32 %v1003, %v1067
        %1069 = vdwg.mxu0
        %v1070 = vsub.f32 0.0, %v1023
        %v1071 = vsub.f32 0.0, %v1026
        %v1072 = vsub.f32 0.0, %v1029
        %v1073 = vsub.f32 0.0, %v1032
        %v1074 = vsub.f32 0.0, %v1035
        %v1075 = vsub.f32 0.0, %v1038
        %v1076 = vsub.f32 0.0, %v1041
        %v1077 = vsub.f32 0.0, %v1044
        %v1078 = vsub.f32 0.0, %v1047
        %v1079 = vsub.f32 0.0, %v1050
        %v1080 = vsub.f32 0.0, %v1053
        %v1081 = vsub.f32 0.0, %v1056
        %v1082 = vsub.f32 0.0, %v1059
        %v1083 = vsub.f32 0.0, %v1062
        %v1084 = vsub.f32 0.0, %v1065
        %v1085 = vsub.f32 0.0, %v1068
        %v1086 = vmul.f32 %v1070, 1.442695
        %v1087 = vpow.pop %v1086
        %v1088 = vmul.f32 %v1071, 1.442695
        %v1089 = vpow.pop %v1088
        %v1090 = vmul.f32 %v1072, 1.442695
        %v1091 = vpow.pop %v1090
        %v1092 = vmul.f32 %v1073, 1.442695
        %v1093 = vpow.pop %v1092
        %v1094 = vmul.f32 %v1074, 1.442695
        %v1095 = vpow.pop %v1094
        %v1096 = vmul.f32 %v1075, 1.442695
        %v1097 = vpow.pop %v1096
        %v1098 = vmul.f32 %v1076, 1.442695
        %v1099 = vpow.pop %v1098
        %v1100 = vmul.f32 %v1077, 1.442695
        %v1101 = vpow.pop %v1100
        %v1102 = vmul.f32 %v1078, 1.442695
        %v1103 = vpow.pop %v1102
        %v1104 = vmul.f32 %v1079, 1.442695
        %v1105 = vpow.pop %v1104
        %v1106 = vmul.f32 %v1080, 1.442695
        %v1107 = vpow.pop %v1106
        %v1108 = vmul.f32 %v1081, 1.442695
        %v1109 = vpow.pop %v1108
        %v1110 = vmul.f32 %v1082, 1.442695
        %v1111 = vpow.pop %v1110
        %v1112 = vmul.f32 %v1083, 1.442695
        %v1113 = vpow.pop %v1112
        %v1114 = vmul.f32 %v1084, 1.442695
        %v1115 = vpow.pop %v1114
        %v1116 = vmul.f32 %v1085, 1.442695
        %v1117 = vpow.pop %v1116
        %v1118 = vadd.f32 %v1087, 1.0
        %v1119 = vadd.f32 %v1089, 1.0
        %v1120 = vadd.f32 %v1091, 1.0
        %v1121 = vadd.f32 %v1093, 1.0
        %v1122 = vadd.f32 %v1095, 1.0
        %v1123 = vadd.f32 %v1097, 1.0
        %v1124 = vadd.f32 %v1099, 1.0
        %v1125 = vadd.f32 %v1101, 1.0
        %v1126 = vadd.f32 %v1103, 1.0
        %v1127 = vadd.f32 %v1105, 1.0
        %v1128 = vadd.f32 %v1107, 1.0
        %v1129 = vadd.f32 %v1109, 1.0
        %v1130 = vadd.f32 %v1111, 1.0
        %v1131 = vadd.f32 %v1113, 1.0
        %v1132 = vadd.f32 %v1115, 1.0
        %v1133 = vadd.f32 %v1117, 1.0
        %v1134 = vrcp.pop %v1118
        %v1135 = vmul.f32 %v1118, %v1134
        %v1136 = vsub.f32 1.0, %v1135
        %v1137 = vmul.f32 %v1134, %v1136
        %v1138 = vadd.f32 %v1134, %v1137
        %vm1139 = vweird.f32 %v1118
        %vm1140 = vweird.f32 %v1134
        %vm1141 = vmor %vm1139, %vm1140
        %v1142 = vsel %vm1141, %v1134, %v1138
        %v1143 = vand.u32 2147483647, %v1118
        %vm1144 = vcmp.eq.f32.partialorder %v1143, 8.507059e+37
        %v1145 = vand.u32 %v1118, 2147483648
        %v1146 = vor.u32 1.1754944e-38, %v1145
        %v1147 = vsel %vm1144, %v1146, %v1142
        %v1148 = vmul.f32 1.0, %v1147
        %v1149 = vrcp.pop %v1119
        %v1150 = vmul.f32 %v1119, %v1149
        %v1151 = vsub.f32 1.0, %v1150
        %v1152 = vmul.f32 %v1149, %v1151
        %v1153 = vadd.f32 %v1149, %v1152
        %vm1154 = vweird.f32 %v1119
        %vm1155 = vweird.f32 %v1149
        %vm1156 = vmor %vm1154, %vm1155
        %v1157 = vsel %vm1156, %v1149, %v1153
        %v1158 = vand.u32 2147483647, %v1119
        %vm1159 = vcmp.eq.f32.partialorder %v1158, 8.507059e+37
        %v1160 = vand.u32 %v1119, 2147483648
        %v1161 = vor.u32 1.1754944e-38, %v1160
        %v1162 = vsel %vm1159, %v1161, %v1157
        %v1163 = vmul.f32 1.0, %v1162
        %v1164 = vrcp.pop %v1120
        %v1165 = vmul.f32 %v1120, %v1164
        %v1166 = vsub.f32 1.0, %v1165
        %v1167 = vmul.f32 %v1164, %v1166
        %v1168 = vadd.f32 %v1164, %v1167
        %vm1169 = vweird.f32 %v1120
        %vm1170 = vweird.f32 %v1164
        %vm1171 = vmor %vm1169, %vm1170
        %v1172 = vsel %vm1171, %v1164, %v1168
        %v1173 = vand.u32 2147483647, %v1120
        %vm1174 = vcmp.eq.f32.partialorder %v1173, 8.507059e+37
        %v1175 = vand.u32 %v1120, 2147483648
        %v1176 = vor.u32 1.1754944e-38, %v1175
        %v1177 = vsel %vm1174, %v1176, %v1172
        %v1178 = vmul.f32 1.0, %v1177
        %v1179 = vrcp.pop %v1121
        %v1180 = vmul.f32 %v1121, %v1179
        %v1181 = vsub.f32 1.0, %v1180
        %v1182 = vmul.f32 %v1179, %v1181
        %v1183 = vadd.f32 %v1179, %v1182
        %vm1184 = vweird.f32 %v1121
        %vm1185 = vweird.f32 %v1179
        %vm1186 = vmor %vm1184, %vm1185
        %v1187 = vsel %vm1186, %v1179, %v1183
        %v1188 = vand.u32 2147483647, %v1121
        %vm1189 = vcmp.eq.f32.partialorder %v1188, 8.507059e+37
        %v1190 = vand.u32 %v1121, 2147483648
        %v1191 = vor.u32 1.1754944e-38, %v1190
        %v1192 = vsel %vm1189, %v1191, %v1187
        %v1193 = vmul.f32 1.0, %v1192
        %v1194 = vrcp.pop %v1122
        %v1195 = vmul.f32 %v1122, %v1194
        %v1196 = vsub.f32 1.0, %v1195
        %v1197 = vmul.f32 %v1194, %v1196
        %v1198 = vadd.f32 %v1194, %v1197
        %vm1199 = vweird.f32 %v1122
        %vm1200 = vweird.f32 %v1194
        %vm1201 = vmor %vm1199, %vm1200
        %v1202 = vsel %vm1201, %v1194, %v1198
        %v1203 = vand.u32 2147483647, %v1122
        %vm1204 = vcmp.eq.f32.partialorder %v1203, 8.507059e+37
        %v1205 = vand.u32 %v1122, 2147483648
        %v1206 = vor.u32 1.1754944e-38, %v1205
        %v1207 = vsel %vm1204, %v1206, %v1202
        %v1208 = vmul.f32 1.0, %v1207
        %v1209 = vrcp.pop %v1123
        %v1210 = vmul.f32 %v1123, %v1209
        %v1211 = vsub.f32 1.0, %v1210
        %v1212 = vmul.f32 %v1209, %v1211
        %v1213 = vadd.f32 %v1209, %v1212
        %vm1214 = vweird.f32 %v1123
        %vm1215 = vweird.f32 %v1209
        %vm1216 = vmor %vm1214, %vm1215
        %v1217 = vsel %vm1216, %v1209, %v1213
        %v1218 = vand.u32 2147483647, %v1123
        %vm1219 = vcmp.eq.f32.partialorder %v1218, 8.507059e+37
        %v1220 = vand.u32 %v1123, 2147483648
        %v1221 = vor.u32 1.1754944e-38, %v1220
        %v1222 = vsel %vm1219, %v1221, %v1217
        %v1223 = vmul.f32 1.0, %v1222
        %v1224 = vrcp.pop %v1124
        %v1225 = vmul.f32 %v1124, %v1224
        %v1226 = vsub.f32 1.0, %v1225
        %v1227 = vmul.f32 %v1224, %v1226
        %v1228 = vadd.f32 %v1224, %v1227
        %vm1229 = vweird.f32 %v1124
        %vm1230 = vweird.f32 %v1224
        %vm1231 = vmor %vm1229, %vm1230
        %v1232 = vsel %vm1231, %v1224, %v1228
        %v1233 = vand.u32 2147483647, %v1124
        %vm1234 = vcmp.eq.f32.partialorder %v1233, 8.507059e+37
        %v1235 = vand.u32 %v1124, 2147483648
        %v1236 = vor.u32 1.1754944e-38, %v1235
        %v1237 = vsel %vm1234, %v1236, %v1232
        %v1238 = vmul.f32 1.0, %v1237
        %v1239 = vrcp.pop %v1125
        %v1240 = vmul.f32 %v1125, %v1239
        %v1241 = vsub.f32 1.0, %v1240
        %v1242 = vmul.f32 %v1239, %v1241
        %v1243 = vadd.f32 %v1239, %v1242
        %vm1244 = vweird.f32 %v1125
        %vm1245 = vweird.f32 %v1239
        %vm1246 = vmor %vm1244, %vm1245
        %v1247 = vsel %vm1246, %v1239, %v1243
        %v1248 = vand.u32 2147483647, %v1125
        %vm1249 = vcmp.eq.f32.partialorder %v1248, 8.507059e+37
        %v1250 = vand.u32 %v1125, 2147483648
        %v1251 = vor.u32 1.1754944e-38, %v1250
        %v1252 = vsel %vm1249, %v1251, %v1247
        %v1253 = vmul.f32 1.0, %v1252
        %v1254 = vrcp.pop %v1126
        %v1255 = vmul.f32 %v1126, %v1254
        %v1256 = vsub.f32 1.0, %v1255
        %v1257 = vmul.f32 %v1254, %v1256
        %v1258 = vadd.f32 %v1254, %v1257
        %vm1259 = vweird.f32 %v1126
        %vm1260 = vweird.f32 %v1254
        %vm1261 = vmor %vm1259, %vm1260
        %v1262 = vsel %vm1261, %v1254, %v1258
        %v1263 = vand.u32 2147483647, %v1126
        %vm1264 = vcmp.eq.f32.partialorder %v1263, 8.507059e+37
        %v1265 = vand.u32 %v1126, 2147483648
        %v1266 = vor.u32 1.1754944e-38, %v1265
        %v1267 = vsel %vm1264, %v1266, %v1262
        %v1268 = vmul.f32 1.0, %v1267
        %v1269 = vrcp.pop %v1127
        %v1270 = vmul.f32 %v1127, %v1269
        %v1271 = vsub.f32 1.0, %v1270
        %v1272 = vmul.f32 %v1269, %v1271
        %v1273 = vadd.f32 %v1269, %v1272
        %vm1274 = vweird.f32 %v1127
        %vm1275 = vweird.f32 %v1269
        %vm1276 = vmor %vm1274, %vm1275
        %v1277 = vsel %vm1276, %v1269, %v1273
        %v1278 = vand.u32 2147483647, %v1127
        %vm1279 = vcmp.eq.f32.partialorder %v1278, 8.507059e+37
        %v1280 = vand.u32 %v1127, 2147483648
        %v1281 = vor.u32 1.1754944e-38, %v1280
        %v1282 = vsel %vm1279, %v1281, %v1277
        %v1283 = vmul.f32 1.0, %v1282
        %v1284 = vrcp.pop %v1128
        %v1285 = vmul.f32 %v1128, %v1284
        %v1286 = vsub.f32 1.0, %v1285
        %v1287 = vmul.f32 %v1284, %v1286
        %v1288 = vadd.f32 %v1284, %v1287
        %vm1289 = vweird.f32 %v1128
        %vm1290 = vweird.f32 %v1284
        %vm1291 = vmor %vm1289, %vm1290
        %v1292 = vsel %vm1291, %v1284, %v1288
        %v1293 = vand.u32 2147483647, %v1128
        %vm1294 = vcmp.eq.f32.partialorder %v1293, 8.507059e+37
        %v1295 = vand.u32 %v1128, 2147483648
        %v1296 = vor.u32 1.1754944e-38, %v1295
        %v1297 = vsel %vm1294, %v1296, %v1292
        %v1298 = vmul.f32 1.0, %v1297
        %v1299 = vrcp.pop %v1129
        %v1300 = vmul.f32 %v1129, %v1299
        %v1301 = vsub.f32 1.0, %v1300
        %v1302 = vmul.f32 %v1299, %v1301
        %v1303 = vadd.f32 %v1299, %v1302
        %vm1304 = vweird.f32 %v1129
        %vm1305 = vweird.f32 %v1299
        %vm1306 = vmor %vm1304, %vm1305
        %v1307 = vsel %vm1306, %v1299, %v1303
        %v1308 = vand.u32 2147483647, %v1129
        %vm1309 = vcmp.eq.f32.partialorder %v1308, 8.507059e+37
        %v1310 = vand.u32 %v1129, 2147483648
        %v1311 = vor.u32 1.1754944e-38, %v1310
        %v1312 = vsel %vm1309, %v1311, %v1307
        %v1313 = vmul.f32 1.0, %v1312
        %v1314 = vrcp.pop %v1130
        %v1315 = vmul.f32 %v1130, %v1314
        %v1316 = vsub.f32 1.0, %v1315
        %v1317 = vmul.f32 %v1314, %v1316
        %v1318 = vadd.f32 %v1314, %v1317
        %vm1319 = vweird.f32 %v1130
        %vm1320 = vweird.f32 %v1314
        %vm1321 = vmor %vm1319, %vm1320
        %v1322 = vsel %vm1321, %v1314, %v1318
        %v1323 = vand.u32 2147483647, %v1130
        %vm1324 = vcmp.eq.f32.partialorder %v1323, 8.507059e+37
        %v1325 = vand.u32 %v1130, 2147483648
        %v1326 = vor.u32 1.1754944e-38, %v1325
        %v1327 = vsel %vm1324, %v1326, %v1322
        %v1328 = vmul.f32 1.0, %v1327
        %v1329 = vrcp.pop %v1131
        %v1330 = vmul.f32 %v1131, %v1329
        %v1331 = vsub.f32 1.0, %v1330
        %v1332 = vmul.f32 %v1329, %v1331
        %v1333 = vadd.f32 %v1329, %v1332
        %vm1334 = vweird.f32 %v1131
        %vm1335 = vweird.f32 %v1329
        %vm1336 = vmor %vm1334, %vm1335
        %v1337 = vsel %vm1336, %v1329, %v1333
        %v1338 = vand.u32 2147483647, %v1131
        %vm1339 = vcmp.eq.f32.partialorder %v1338, 8.507059e+37
        %v1340 = vand.u32 %v1131, 2147483648
        %v1341 = vor.u32 1.1754944e-38, %v1340
        %v1342 = vsel %vm1339, %v1341, %v1337
        %v1343 = vmul.f32 1.0, %v1342
        %v1344 = vrcp.pop %v1132
        %v1345 = vmul.f32 %v1132, %v1344
        %v1346 = vsub.f32 1.0, %v1345
        %v1347 = vmul.f32 %v1344, %v1346
        %v1348 = vadd.f32 %v1344, %v1347
        %vm1349 = vweird.f32 %v1132
        %vm1350 = vweird.f32 %v1344
        %vm1351 = vmor %vm1349, %vm1350
        %v1352 = vsel %vm1351, %v1344, %v1348
        %v1353 = vand.u32 2147483647, %v1132
        %vm1354 = vcmp.eq.f32.partialorder %v1353, 8.507059e+37
        %v1355 = vand.u32 %v1132, 2147483648
        %v1356 = vor.u32 1.1754944e-38, %v1355
        %v1357 = vsel %vm1354, %v1356, %v1352
        %v1358 = vmul.f32 1.0, %v1357
        %v1359 = vrcp.pop %v1133
        %v1360 = vmul.f32 %v1133, %v1359
        %v1361 = vsub.f32 1.0, %v1360
        %v1362 = vmul.f32 %v1359, %v1361
        %v1363 = vadd.f32 %v1359, %v1362
        %vm1364 = vweird.f32 %v1133
        %vm1365 = vweird.f32 %v1359
        %vm1366 = vmor %vm1364, %vm1365
        %v1367 = vsel %vm1366, %v1359, %v1363
        %v1368 = vand.u32 2147483647, %v1133
        %vm1369 = vcmp.eq.f32.partialorder %v1368, 8.507059e+37
        %v1370 = vand.u32 %v1133, 2147483648
        %v1371 = vor.u32 1.1754944e-38, %v1370
        %v1372 = vsel %vm1369, %v1371, %v1367
        %v1373 = vmul.f32 1.0, %v1372
        %v1374 = vmul.f32 %v1023, %v1148
        %v1375 = vmul.f32 %v1026, %v1163
        %v1376 = vmul.f32 %v1029, %v1178
        %v1377 = vmul.f32 %v1032, %v1193
        %v1378 = vmul.f32 %v1035, %v1208
        %v1379 = vmul.f32 %v1038, %v1223
        %v1380 = vmul.f32 %v1041, %v1238
        %v1381 = vmul.f32 %v1044, %v1253
        %v1382 = vmul.f32 %v1047, %v1268
        %v1383 = vmul.f32 %v1050, %v1283
        %v1384 = vmul.f32 %v1053, %v1298
        %v1385 = vmul.f32 %v1056, %v1313
        %v1386 = vmul.f32 %v1059, %v1328
        %v1387 = vmul.f32 %v1062, %v1343
        %v1388 = vmul.f32 %v1065, %v1358
        %v1389 = vmul.f32 %v1068, %v1373
        %1390 = vst [vmem:[%s177] sm:$0xff] %v1374
        %1391 = vst [vmem:[%s177 + $0x8] sm:$0xff] %v1375
        %1392 = vst [vmem:[%s177 + $0x10] sm:$0xff] %v1376
        %1393 = vst [vmem:[%s177 + $0x18] sm:$0xff] %v1377
        %1394 = vst [vmem:[%s177 + $0x20] sm:$0xff] %v1378
        %1395 = vst [vmem:[%s177 + $0x28] sm:$0xff] %v1379
        %1396 = vst [vmem:[%s177 + $0x30] sm:$0xff] %v1380
        %1397 = vst [vmem:[%s177 + $0x38] sm:$0xff] %v1381
        %1398 = vst [vmem:[%s177 + $0x40] sm:$0xff] %v1382
        %1399 = vst [vmem:[%s177 + $0x48] sm:$0xff] %v1383
        %1400 = vst [vmem:[%s177 + $0x50] sm:$0xff] %v1384
        %1401 = vst [vmem:[%s177 + $0x58] sm:$0xff] %v1385
        %1402 = vst [vmem:[%s177 + $0x60] sm:$0xff] %v1386
        %1403 = vst [vmem:[%s177 + $0x68] sm:$0xff] %v1387
        %1404 = vst [vmem:[%s177 + $0x70] sm:$0xff] %v1388
        %1405 = vst [vmem:[%s177 + $0x78] sm:$0xff] %v1389
        %s1406 = sand.u32 %s107, 1
        %s1407 = scalar_lea.sflag [#allocation3], %s1406
        %s1408 = sand.u32 %s107, 1
        %s1409 = smul.addr %s1408, 128
        %s1410 = scalar_lea.vmem [#allocation2], %s1409
        // Predicated region
        $region33: #{tpu_custom_call.1} parent=31 // pred_check
          %p1411 = pneg %p117
        $region34: #{tpu_custom_call.1} parent=31 // pred_check_branch
          %1413 = sbr.rel (%p1411) target = $region36
        $region35: #{tpu_custom_call.1} parent=31 // pred_region
          %s1414 = smul.u32 8, %s22
          %1416 = vsyncadd %s1407, 0
          %s1417 = smul.addr %s1414, 2
          %s1418 = smul.addr %s21, 32
          %s1419 = sadd.s32 %s1417, %s1418
          %s1420 = smul.addr %s1419, 8
          %s1421 = scalar_lea.hbm %s3, %s1420
          %s1422 = sshll.u32 %s1410, 4
          %s1423 = int_to_ptr.vmem [resolvable:$true] %s1422
          %s1424 = sshll.u32 %s1421, 4
          %s1425 = int_to_ptr.hbm [resolvable:$true] %s1424
          %1430 = dma.vmem_to_hbm [thread:$0]  %s1423, 2048, %s1425, %s1407, 128, 128, 8
        $region36: #{tpu_custom_call.1} parent=31 // pred_fallthru
          _
      $region32: #{tpu_custom_call.1} parent=5 // pred_fallthru
        _
      %p1431 = scmp.le.s32.totalorder 2, %s12
      // Predicated region
      $region37: #{tpu_custom_call.1} parent=5 // pred_check
        %p1432 = pneg %p1431
      $region38: #{tpu_custom_call.1} parent=5 // pred_check_branch
        %1434 = sbr.rel (%p1432) target = $region40
      $region39: #{tpu_custom_call.1} parent=5 // pred_region
        %s1435 = ssub.s32 %s12, 2
        // Predicated region
        $region41: #{tpu_custom_call.1} parent=39 // pred_check
          %p1436 = pneg %p123
        $region42: #{tpu_custom_call.1} parent=39 // pred_check_branch
          %1438 = sbr.rel (%p1436) target = $region44
        $region43: #{tpu_custom_call.1} parent=39 // pred_region
          %s1439 = sand.u32 %s108, 1
          %s1440 = scalar_lea.sflag [#allocation3], %s1439
          %s1441 = sand.u32 %s108, 1
          %s1442 = smul.addr %s1441, 128
          %s1443 = scalar_lea.vmem [#allocation2], %s1442
          %1445 = dma.done %s1440, 2048
        $region44: #{tpu_custom_call.1} parent=39 // pred_fallthru
          _
      $region40: #{tpu_custom_call.1} parent=5 // pred_fallthru
        _
    $region6: #{tpu_custom_call.1} parent=1 // loop_footer
      %s16 = sadd.s32 1, %s12
    $region7: #{tpu_custom_call.1} parent=1 // loop_footer_branch
      %11 = sbr.rel target = $region3
    $region8: #{tpu_custom_call.1} parent=1 // loop_exit
      _
    %1446 = vsyncpa [#allocation3], 1
    %s1447 = scalar_lea.sflag [#allocation3], 1
    %1448 = vsyncpa %s1447, 1

</llo_original>
